<compile_context>
chip_gen: v7x
topology: tpu7x:2x2x1
jax: 0.10.0
libtpu: 0.0.40
codegen_flags: <defaults>
</compile_context>

<pallas_src>
import functools

import jax
import jax.numpy as jnp
from jax.experimental import pallas as pl
from jax.experimental.pallas import tpu as pltpu

EPS = 1e-5  # nn.LayerNorm default

# GELU(approximate='tanh'):  0.5*x*(1+tanh(z)) == x*sigmoid(2z)  (exact rewrite)
_GELU_A = 2.0 * 0.7978845608028654            # 2*sqrt(2/pi)
_GELU_B = _GELU_A * 0.044715


def _normalize(v):
    """(v - mean) * rsqrt(var + eps) over the last axis; one data pass, f32."""
    inv_n = 1.0 / v.shape[-1]
    s1 = jnp.sum(v, axis=-1, keepdims=True)
    s2 = jnp.sum(v * v, axis=-1, keepdims=True)
    mu = s1 * inv_n
    var = jnp.maximum(s2 * inv_n - mu * mu, 0.0)   # clamp: cancellation safety
    return (v - mu) * jax.lax.rsqrt(var + EPS)


def final_layer_kernel(x_ref, shift_ref, scale_ref,
                       fc1_w, fc1_b, fc2_w, fc2_b,
                       o_ref, *, nsub):
    x = x_ref[...].astype(jnp.float32)            # (TP, H)
    shift = shift_ref[...]                        # (1, H) = nf_b*(1+scale)+shift
    scl = scale_ref[...]                          # (1, H) = nf_w*(1+scale)

    # modulate(norm_final(x), shift, scale) with norm_final affine pre-folded.
    xm = _normalize(x) * scl + shift
    # LN1 (affine folded into fc1 weights/bias); bf16 operand for the MXU.
    h1 = _normalize(xm).astype(jnp.bfloat16)

    w1 = fc1_w[...]
    b1 = fc1_b[...]
    w2 = fc2_w[...]
    b2 = fc2_b[...]

    tp = h1.shape[0]
    sub = tp // nsub
    for s in range(nsub):     # unrolled: MXU of sub-tile s overlaps VPU of s-1
        hs = h1 if nsub == 1 else h1[s * sub:(s + 1) * sub, :]
        g = jnp.dot(hs, w1, preferred_element_type=jnp.float32) + b1
        gb = g.astype(jnp.bfloat16)               # bf16 VPU/EUP elementwise chain
        act = gb * jax.nn.sigmoid(_GELU_A * gb + _GELU_B * (gb * gb * gb))
        gn = _normalize(act.astype(jnp.float32))  # LN2 stats f32; affine in fc2
        out = jnp.dot(gn.astype(jnp.bfloat16), w2,
                      preferred_element_type=jnp.float32) + b2
        if nsub == 1:
            o_ref[...] = out                      # lane-dense (TP, O_pad) store
        else:
            o_ref[pl.ds(s * sub, sub), :] = out


def final_layer(x, y, params, *, tp=None):
    """x: (B, P, H) f32, y: (B, H) f32 -> (B, P, O) f32."""
    B, P, H = x.shape
    O = params["fc2_w"].shape[-1]
    H4 = 4 * H

    # ---- adaLN modulation + norm_final affine, hoisted (tiny M=B GEMM) ------
    y_silu = y * jax.nn.sigmoid(y)
    mod = y_silu @ params["ada_w"] + params["ada_b"][0]          # (B, 2H)
    shift, scl = mod[:, :H], mod[:, H:]
    one_plus = 1.0 + scl
    scale_eff = (params["nf_w"][0] * one_plus).reshape(B, 1, H).astype(jnp.float32)
    shift_eff = (params["nf_b"][0] * one_plus + shift).reshape(B, 1, H).astype(jnp.float32)

    # ---- fold LN1 / LN2 affines into the GEMMs ------------------------------
    fc1_w = params["ln1_w"][0][:, None] * params["fc1_w"]
    fc1_b = (params["fc1_b"][0] + params["ln1_b"][0] @ params["fc1_w"]).reshape(1, H4)
    fc2_w = params["ln2_w"][0][:, None] * params["fc2_w"]
    fc2_b = (params["fc2_b"][0] + params["ln2_b"][0] @ params["fc2_w"]).reshape(1, O)

    # ---- lane-dense output: pad O to a multiple of 128 ----------------------
    O_pad = max(128, pl.cdiv(O, 128) * 128)
    if O_pad != O:
        fc2_w = jnp.pad(fc2_w, ((0, 0), (0, O_pad - O)))
        fc2_b = jnp.pad(fc2_b, ((0, 0), (0, O_pad - O)))

    fc1_w = fc1_w.astype(jnp.bfloat16)            # bf16 MXU operands
    fc2_w = fc2_w.astype(jnp.bfloat16)
    fc1_b = fc1_b.astype(jnp.float32)
    fc2_b = fc2_b.astype(jnp.float32)
    weights = [fc1_w, fc1_b, fc2_w, fc2_b]

    # ---- generation-aware VMEM budget / token-tile selection ----------------
    try:
        vmem_cap = int(pltpu.get_tpu_info().vmem_capacity_bytes)
    except Exception:
        vmem_cap = 64 * 2**20                     # conservative (v7x per-core)
    if tp is None:
        tp = 512 if vmem_cap >= 96 * 2**20 else 256   # v5e/v6e : v7x

    TP = P if P <= tp else tp
    P_pad = pl.cdiv(P, TP) * TP
    if P_pad != P:
        x = jnp.pad(x, ((0, 0), (0, P_pad - P), (0, 0)))
    x = x.astype(jnp.bfloat16)                    # halve x DMA/VMEM; LN stats f32

    nsub = 2 if TP % 32 == 0 else 1               # sub-tile interleave (aligned rows)
    kernel = functools.partial(final_layer_kernel, nsub=nsub)

    def build(single_buffer):
        def const_spec(arr):
            nd = arr.ndim
            idx = lambda *_g, _nd=nd: (0,) * _nd
            if single_buffer:
                return pl.BlockSpec(arr.shape, idx, pipeline_mode=pl.Buffered(1))
            return pl.BlockSpec(arr.shape, idx)

        w_bytes = sum(a.size * a.dtype.itemsize for a in weights)
        est = (w_bytes * (1 if single_buffer else 2)
               + 2 * TP * H * 2                   # x tile (bf16, double-buffered)
               + 2 * TP * O_pad * 4               # out tile (f32, double-buffered)
               + 4 * TP * H * 4                   # (TP, H) f32 temporaries
               + 3 * TP * H4 * 4                  # (TP, 4H) f32/bf16 intermediates
               + 8 * H * 4)
        vmem_limit = int(min(max(est * 1.4, 16 * 2**20), 0.85 * vmem_cap))

        return pl.pallas_call(
            kernel,
            out_shape=jax.ShapeDtypeStruct((B, P_pad, O_pad), jnp.float32),
            grid_spec=pltpu.PrefetchScalarGridSpec(
                num_scalar_prefetch=0,
                grid=(B, P_pad // TP),
                in_specs=[pl.BlockSpec((None, TP, H), lambda b, p: (b, p, 0)),
                          pl.BlockSpec((None, 1, H), lambda b, p: (b, 0, 0)),
                          pl.BlockSpec((None, 1, H), lambda b, p: (b, 0, 0))]
                         + [const_spec(a) for a in weights],
                out_specs=pl.BlockSpec((None, TP, O_pad), lambda b, p: (b, p, 0)),
            ),
            compiler_params=pltpu.CompilerParams(
                dimension_semantics=("parallel", "parallel"),
                vmem_limit_bytes=vmem_limit),
        )

    try:
        out = build(single_buffer=True)(x, shift_eff, scale_eff, *weights)
    except Exception:
        # Fallback if this JAX build rejects Buffered(1) on constant inputs.
        out = build(single_buffer=False)(x, shift_eff, scale_eff, *weights)

    # TODO(synk): let the consumer take the padded (B, P_pad, O_pad) slab (or a
    # bf16 output) directly to avoid this extra HBM round trip.
    return out[:, :P, :O]


def init_params(key, hidden_size, output_size):
    H, O = hidden_size, output_size
    ks = jax.random.split(key, 6)
    s = 0.05
    return {
        # norm_final
        "nf_w": jnp.ones((1, H), jnp.float32),
        "nf_b": jnp.zeros((1, H), jnp.float32),
        # adaLN_modulation Linear(H, 2H)
        "ada_w": s * jax.random.normal(ks[0], (H, 2 * H), jnp.float32),
        "ada_b": s * jax.random.normal(ks[1], (1, 2 * H), jnp.float32),
        # proj[0] LayerNorm(H)
        "ln1_w": jnp.ones((1, H), jnp.float32),
        "ln1_b": jnp.zeros((1, H), jnp.float32),
        # proj[1] Linear(H, 4H)
        "fc1_w": s * jax.random.normal(ks[2], (H, 4 * H), jnp.float32),
        "fc1_b": s * jax.random.normal(ks[3], (1, 4 * H), jnp.float32),
        # proj[3] LayerNorm(4H)
        "ln2_w": jnp.ones((1, 4 * H), jnp.float32),
        "ln2_b": jnp.zeros((1, 4 * H), jnp.float32),
        # proj[4] Linear(4H, O)
        "fc2_w": s * jax.random.normal(ks[4], (4 * H, O), jnp.float32),
        "fc2_b": s * jax.random.normal(ks[5], (1, O), jnp.float32),
    }


def final_layer_ref(x, y, p):
    """Pure-JAX f32 reference mirroring the PyTorch forward."""
    def ln(v, w, b):
        mu = jnp.mean(v, axis=-1, keepdims=True)
        var = jnp.mean((v - mu) ** 2, axis=-1, keepdims=True)
        return (v - mu) / jnp.sqrt(var + EPS) * w + b

    H = x.shape[-1]
    y_silu = y * jax.nn.sigmoid(y)
    mod = y_silu @ p["ada_w"] + p["ada_b"][0]
    shift, sc = mod[:, :H], mod[:, H:]
    xn = ln(x, p["nf_w"][0], p["nf_b"][0])
    xm = xn * (1.0 + sc[:, None, :]) + shift[:, None, :]
    h = ln(xm, p["ln1_w"][0], p["ln1_b"][0])
    h = h @ p["fc1_w"] + p["fc1_b"][0]
    c = 0.7978845608028654
    h = 0.5 * h * (1.0 + jnp.tanh(c * (h + 0.044715 * h ** 3)))
    h = ln(h, p["ln2_w"][0], p["ln2_b"][0])
    return h @ p["fc2_w"] + p["fc2_b"][0]


if __name__ == "__main__":
    B, P, H, O = 2, 8, 32, 16
    key = jax.random.PRNGKey(0)
    kx, ky, kp = jax.random.split(key, 3)
    x = jax.random.normal(kx, (B, P, H), jnp.float32)
    y = jax.random.normal(ky, (B, H), jnp.float32)
    params = init_params(kp, H, O)

    out = final_layer(x, y, params)
    out = jax.block_until_ready(out)

    ref = final_layer_ref(x, y, params)
    assert out.shape == (B, P, O)
    # bf16 x / bf16 MXU operands / bf16 GELU chain (f32 accum + f32 LN stats)
    # -> loosened tolerance vs the f32 reference.
    assert jnp.allclose(out, ref, atol=3e-2, rtol=3e-2), "mismatch vs reference"
    print("KERNEL_OK")
</pallas_src>

<mosaic_0001>
module attributes {stable_mosaic.version = 11 : i64} {
  func.func @final_layer_kernel(%arg0: i32, %arg1: i32, %arg2: memref<1x8x32xbf16, #tpu.memory_space<vmem>>, %arg3: memref<1x1x32xf32, #tpu.memory_space<vmem>>, %arg4: memref<1x1x32xf32, #tpu.memory_space<vmem>>, %arg5: memref<32x128xbf16, #tpu.memory_space<vmem>>, %arg6: memref<1x128xf32, #tpu.memory_space<vmem>>, %arg7: memref<128x128xbf16, #tpu.memory_space<vmem>>, %arg8: memref<1x128xf32, #tpu.memory_space<vmem>>, %arg9: memref<1x8x128xf32, #tpu.memory_space<vmem>>) attributes {dimension_semantics = [#tpu.dimension_semantics<parallel>, #tpu.dimension_semantics<parallel>], iteration_bounds = array<i64: 2, 1>, scalar_prefetch = 0 : i64, scratch_operands = 0 : i64, tpu.core_type = #tpu.core_type<tc>, window_params = [{transform_indices = @transform_0, window_bounds = array<i64: 1, 8, 32>}, {transform_indices = @transform_1, window_bounds = array<i64: 1, 1, 32>}, {transform_indices = @transform_2, window_bounds = array<i64: 1, 1, 32>}, {pipeline_mode = #tpu.pipeline_mode<synchronous>, transform_indices = @transform_3, window_bounds = array<i64: 32, 128>}, {pipeline_mode = #tpu.pipeline_mode<synchronous>, transform_indices = @transform_4, window_bounds = array<i64: 1, 128>}, {pipeline_mode = #tpu.pipeline_mode<synchronous>, transform_indices = @transform_5, window_bounds = array<i64: 128, 128>}, {pipeline_mode = #tpu.pipeline_mode<synchronous>, transform_indices = @transform_6, window_bounds = array<i64: 1, 128>}, {transform_indices = @transform_7, window_bounds = array<i64: 1, 8, 128>}]} {
    %c0 = arith.constant 0 : index
    %c0_0 = arith.constant 0 : index
    %c0_1 = arith.constant 0 : index
    %0 = vector.load %arg2[%c0, %c0_0, %c0_1] : memref<1x8x32xbf16, #tpu.memory_space<vmem>>, vector<1x8x32xbf16>
    %1 = vector.shape_cast %0 : vector<1x8x32xbf16> to vector<8x32xbf16>
    %2 = arith.extf %1 : vector<8x32xbf16> to vector<8x32xf32>
    %c0_2 = arith.constant 0 : index
    %c0_3 = arith.constant 0 : index
    %c0_4 = arith.constant 0 : index
    %3 = vector.load %arg3[%c0_2, %c0_3, %c0_4] : memref<1x1x32xf32, #tpu.memory_space<vmem>>, vector<1x1x32xf32>
    %4 = vector.shape_cast %3 : vector<1x1x32xf32> to vector<1x32xf32>
    %c0_5 = arith.constant 0 : index
    %c0_6 = arith.constant 0 : index
    %c0_7 = arith.constant 0 : index
    %5 = vector.load %arg4[%c0_5, %c0_6, %c0_7] : memref<1x1x32xf32, #tpu.memory_space<vmem>>, vector<1x1x32xf32>
    %6 = vector.shape_cast %5 : vector<1x1x32xf32> to vector<1x32xf32>
    %cst = arith.constant dense<0.000000e+00> : vector<8xf32>
    %7 = vector.multi_reduction <add>, %2, %cst [1] : vector<8x32xf32> to vector<8xf32>
    %8 = vector.shape_cast %7 : vector<8xf32> to vector<8x1xf32>
    %9 = arith.mulf %2, %2 : vector<8x32xf32>
    %cst_8 = arith.constant dense<0.000000e+00> : vector<8xf32>
    %10 = vector.multi_reduction <add>, %9, %cst_8 [1] : vector<8x32xf32> to vector<8xf32>
    %11 = vector.shape_cast %10 : vector<8xf32> to vector<8x1xf32>
    %cst_9 = arith.constant 3.125000e-02 : f32
    %12 = vector.broadcast %cst_9 : f32 to vector<8x1xf32>
    %13 = arith.mulf %8, %12 : vector<8x1xf32>
    %cst_10 = arith.constant 3.125000e-02 : f32
    %14 = vector.broadcast %cst_10 : f32 to vector<8x1xf32>
    %15 = arith.mulf %11, %14 : vector<8x1xf32>
    %16 = arith.mulf %13, %13 : vector<8x1xf32>
    %17 = arith.subf %15, %16 : vector<8x1xf32>
    %cst_11 = arith.constant 0.000000e+00 : f32
    %18 = vector.broadcast %cst_11 : f32 to vector<8x1xf32>
    %19 = arith.maximumf %17, %18 : vector<8x1xf32>
    %20 = vector.broadcast %13 : vector<8x1xf32> to vector<8x32xf32>
    %21 = arith.subf %2, %20 : vector<8x32xf32>
    %cst_12 = arith.constant 9.99999974E-6 : f32
    %22 = vector.broadcast %cst_12 : f32 to vector<8x1xf32>
    %23 = arith.addf %19, %22 : vector<8x1xf32>
    %24 = math.rsqrt %23 : vector<8x1xf32>
    %25 = vector.broadcast %24 : vector<8x1xf32> to vector<8x32xf32>
    %26 = arith.mulf %21, %25 : vector<8x32xf32>
    %27 = vector.broadcast %6 : vector<1x32xf32> to vector<8x32xf32>
    %28 = arith.mulf %26, %27 : vector<8x32xf32>
    %29 = vector.broadcast %4 : vector<1x32xf32> to vector<8x32xf32>
    %30 = arith.addf %28, %29 : vector<8x32xf32>
    %cst_13 = arith.constant dense<0.000000e+00> : vector<8xf32>
    %31 = vector.multi_reduction <add>, %30, %cst_13 [1] : vector<8x32xf32> to vector<8xf32>
    %32 = vector.shape_cast %31 : vector<8xf32> to vector<8x1xf32>
    %33 = arith.mulf %30, %30 : vector<8x32xf32>
    %cst_14 = arith.constant dense<0.000000e+00> : vector<8xf32>
    %34 = vector.multi_reduction <add>, %33, %cst_14 [1] : vector<8x32xf32> to vector<8xf32>
    %35 = vector.shape_cast %34 : vector<8xf32> to vector<8x1xf32>
    %cst_15 = arith.constant 3.125000e-02 : f32
    %36 = vector.broadcast %cst_15 : f32 to vector<8x1xf32>
    %37 = arith.mulf %32, %36 : vector<8x1xf32>
    %cst_16 = arith.constant 3.125000e-02 : f32
    %38 = vector.broadcast %cst_16 : f32 to vector<8x1xf32>
    %39 = arith.mulf %35, %38 : vector<8x1xf32>
    %40 = arith.mulf %37, %37 : vector<8x1xf32>
    %41 = arith.subf %39, %40 : vector<8x1xf32>
    %cst_17 = arith.constant 0.000000e+00 : f32
    %42 = vector.broadcast %cst_17 : f32 to vector<8x1xf32>
    %43 = arith.maximumf %41, %42 : vector<8x1xf32>
    %44 = vector.broadcast %37 : vector<8x1xf32> to vector<8x32xf32>
    %45 = arith.subf %30, %44 : vector<8x32xf32>
    %cst_18 = arith.constant 9.99999974E-6 : f32
    %46 = vector.broadcast %cst_18 : f32 to vector<8x1xf32>
    %47 = arith.addf %43, %46 : vector<8x1xf32>
    %48 = math.rsqrt %47 : vector<8x1xf32>
    %49 = vector.broadcast %48 : vector<8x1xf32> to vector<8x32xf32>
    %50 = arith.mulf %45, %49 : vector<8x32xf32>
    %51 = arith.truncf %50 : vector<8x32xf32> to vector<8x32xbf16>
    %c0_19 = arith.constant 0 : index
    %c0_20 = arith.constant 0 : index
    %52 = vector.load %arg5[%c0_19, %c0_20] : memref<32x128xbf16, #tpu.memory_space<vmem>>, vector<32x128xbf16>
    %c0_21 = arith.constant 0 : index
    %c0_22 = arith.constant 0 : index
    %53 = vector.load %arg6[%c0_21, %c0_22] : memref<1x128xf32, #tpu.memory_space<vmem>>, vector<1x128xf32>
    %c0_23 = arith.constant 0 : index
    %c0_24 = arith.constant 0 : index
    %54 = vector.load %arg7[%c0_23, %c0_24] : memref<128x128xbf16, #tpu.memory_space<vmem>>, vector<128x128xbf16>
    %c0_25 = arith.constant 0 : index
    %c0_26 = arith.constant 0 : index
    %55 = vector.load %arg8[%c0_25, %c0_26] : memref<1x128xf32, #tpu.memory_space<vmem>>, vector<1x128xf32>
    %cst_27 = arith.constant dense<0.000000e+00> : vector<8x128xf32>
    %56 = tpu.matmul %51, %52, %cst_27 {dimension_numbers = #tpu.dot_dimension_numbers<[1], [0], [0], [1], [0, 0, 1, 1], [], []>} : vector<8x32xbf16>, vector<32x128xbf16>, vector<8x128xf32> -> vector<8x128xf32>
    %57 = vector.broadcast %53 : vector<1x128xf32> to vector<8x128xf32>
    %58 = arith.addf %56, %57 : vector<8x128xf32>
    %59 = arith.truncf %58 : vector<8x128xf32> to vector<8x128xbf16>
    %cst_28 = arith.constant 1.593750e+00 : bf16
    %60 = vector.broadcast %cst_28 : bf16 to vector<8x128xbf16>
    %61 = arith.mulf %60, %59 : vector<8x128xbf16>
    %62 = arith.mulf %59, %59 : vector<8x128xbf16>
    %63 = arith.mulf %62, %59 : vector<8x128xbf16>
    %cst_29 = arith.constant 7.128900e-02 : bf16
    %64 = vector.broadcast %cst_29 : bf16 to vector<8x128xbf16>
    %65 = arith.mulf %64, %63 : vector<8x128xbf16>
    %66 = arith.addf %61, %65 : vector<8x128xbf16>
    %67 = arith.negf %66 : vector<8x128xbf16>
    %68 = math.exp %67 : vector<8x128xbf16>
    %cst_30 = arith.constant 1.000000e+00 : bf16
    %69 = vector.broadcast %cst_30 : bf16 to vector<8x128xbf16>
    %70 = arith.addf %69, %68 : vector<8x128xbf16>
    %71 = arith.divf %69, %70 : vector<8x128xbf16>
    %72 = arith.mulf %59, %71 : vector<8x128xbf16>
    %73 = arith.extf %72 : vector<8x128xbf16> to vector<8x128xf32>
    %cst_31 = arith.constant dense<0.000000e+00> : vector<8xf32>
    %74 = vector.multi_reduction <add>, %73, %cst_31 [1] : vector<8x128xf32> to vector<8xf32>
    %75 = vector.shape_cast %74 : vector<8xf32> to vector<8x1xf32>
    %76 = arith.mulf %73, %73 : vector<8x128xf32>
    %cst_32 = arith.constant dense<0.000000e+00> : vector<8xf32>
    %77 = vector.multi_reduction <add>, %76, %cst_32 [1] : vector<8x128xf32> to vector<8xf32>
    %78 = vector.shape_cast %77 : vector<8xf32> to vector<8x1xf32>
    %cst_33 = arith.constant 7.812500e-03 : f32
    %79 = vector.broadcast %cst_33 : f32 to vector<8x1xf32>
    %80 = arith.mulf %75, %79 : vector<8x1xf32>
    %cst_34 = arith.constant 7.812500e-03 : f32
    %81 = vector.broadcast %cst_34 : f32 to vector<8x1xf32>
    %82 = arith.mulf %78, %81 : vector<8x1xf32>
    %83 = arith.mulf %80, %80 : vector<8x1xf32>
    %84 = arith.subf %82, %83 : vector<8x1xf32>
    %cst_35 = arith.constant 0.000000e+00 : f32
    %85 = vector.broadcast %cst_35 : f32 to vector<8x1xf32>
    %86 = arith.maximumf %84, %85 : vector<8x1xf32>
    %87 = vector.broadcast %80 : vector<8x1xf32> to vector<8x128xf32>
    %88 = arith.subf %73, %87 : vector<8x128xf32>
    %cst_36 = arith.constant 9.99999974E-6 : f32
    %89 = vector.broadcast %cst_36 : f32 to vector<8x1xf32>
    %90 = arith.addf %86, %89 : vector<8x1xf32>
    %91 = math.rsqrt %90 : vector<8x1xf32>
    %92 = vector.broadcast %91 : vector<8x1xf32> to vector<8x128xf32>
    %93 = arith.mulf %88, %92 : vector<8x128xf32>
    %94 = arith.truncf %93 : vector<8x128xf32> to vector<8x128xbf16>
    %cst_37 = arith.constant dense<0.000000e+00> : vector<8x128xf32>
    %95 = tpu.matmul %94, %54, %cst_37 {dimension_numbers = #tpu.dot_dimension_numbers<[1], [0], [0], [1], [0, 0, 1, 1], [], []>} : vector<8x128xbf16>, vector<128x128xbf16>, vector<8x128xf32> -> vector<8x128xf32>
    %96 = vector.broadcast %55 : vector<1x128xf32> to vector<8x128xf32>
    %97 = arith.addf %95, %96 : vector<8x128xf32>
    %c0_38 = arith.constant 0 : index
    %c0_39 = arith.constant 0 : index
    %c0_40 = arith.constant 0 : index
    %98 = vector.load %arg9[%c0_38, %c0_39, %c0_40] : memref<1x8x128xf32, #tpu.memory_space<vmem>>, vector<1x8x128xf32>
    %99 = vector.shape_cast %98 : vector<1x8x128xf32> to vector<8x128xf32>
    %100 = vector.shape_cast %97 : vector<8x128xf32> to vector<1x8x128xf32>
    tpu.vector_store %arg9[%c0_38, %c0_39, %c0_40], %100 {strides = array<i32>} : memref<1x8x128xf32, #tpu.memory_space<vmem>>, vector<1x8x128xf32>,
    return
  }
  func.func @transform_0(%arg0: i32, %arg1: i32) -> (i32, i32, i32) {
    %c0_i32 = arith.constant 0 : i32
    %c0_i32_0 = arith.constant 0 : i32
    return %arg0, %arg1, %c0_i32 : i32, i32, i32
  }
  func.func @transform_1(%arg0: i32, %arg1: i32) -> (i32, i32, i32) {
    %c0_i32 = arith.constant 0 : i32
    %c0_i32_0 = arith.constant 0 : i32
    %c0_i32_1 = arith.constant 0 : i32
    return %arg0, %c0_i32, %c0_i32_0 : i32, i32, i32
  }
  func.func @transform_2(%arg0: i32, %arg1: i32) -> (i32, i32, i32) {
    %c0_i32 = arith.constant 0 : i32
    %c0_i32_0 = arith.constant 0 : i32
    %c0_i32_1 = arith.constant 0 : i32
    return %arg0, %c0_i32, %c0_i32_0 : i32, i32, i32
  }
  func.func @transform_3(%arg0: i32, %arg1: i32) -> (i32, i32) {
    %c0_i32 = arith.constant 0 : i32
    %c0_i32_0 = arith.constant 0 : i32
    %c0_i32_1 = arith.constant 0 : i32
    return %c0_i32, %c0_i32_0 : i32, i32
  }
  func.func @transform_4(%arg0: i32, %arg1: i32) -> (i32, i32) {
    %c0_i32 = arith.constant 0 : i32
    %c0_i32_0 = arith.constant 0 : i32
    %c0_i32_1 = arith.constant 0 : i32
    return %c0_i32, %c0_i32_0 : i32, i32
  }
  func.func @transform_5(%arg0: i32, %arg1: i32) -> (i32, i32) {
    %c0_i32 = arith.constant 0 : i32
    %c0_i32_0 = arith.constant 0 : i32
    %c0_i32_1 = arith.constant 0 : i32
    return %c0_i32, %c0_i32_0 : i32, i32
  }
  func.func @transform_6(%arg0: i32, %arg1: i32) -> (i32, i32) {
    %c0_i32 = arith.constant 0 : i32
    %c0_i32_0 = arith.constant 0 : i32
    %c0_i32_1 = arith.constant 0 : i32
    return %c0_i32, %c0_i32_0 : i32, i32
  }
  func.func @transform_7(%arg0: i32, %arg1: i32) -> (i32, i32, i32) {
    %c0_i32 = arith.constant 0 : i32
    %c0_i32_0 = arith.constant 0 : i32
    return %arg0, %arg1, %c0_i32 : i32, i32, i32
  }
}

module attributes {stable_mosaic.version = 11 : i64} {
  func.func @final_layer_kernel(%arg0: i32, %arg1: i32, %arg2: memref<1x8x32xbf16, #tpu.memory_space<vmem>>, %arg3: memref<1x1x32xf32, #tpu.memory_space<vmem>>, %arg4: memref<1x1x32xf32, #tpu.memory_space<vmem>>, %arg5: memref<32x128xbf16, #tpu.memory_space<vmem>>, %arg6: memref<1x128xf32, #tpu.memory_space<vmem>>, %arg7: memref<128x128xbf16, #tpu.memory_space<vmem>>, %arg8: memref<1x128xf32, #tpu.memory_space<vmem>>, %arg9: memref<1x8x128xf32, #tpu.memory_space<vmem>>) attributes {dimension_semantics = [#tpu.dimension_semantics<parallel>, #tpu.dimension_semantics<parallel>], iteration_bounds = array<i64: 2, 1>, scalar_prefetch = 0 : i64, scratch_operands = 0 : i64, tpu.core_type = #tpu.core_type<tc>, window_params = [{transform_indices = @transform_0, window_bounds = array<i64: 1, 8, 32>}, {transform_indices = @transform_1, window_bounds = array<i64: 1, 1, 32>}, {transform_indices = @transform_2, window_bounds = array<i64: 1, 1, 32>}, {pipeline_mode = #tpu.pipeline_mode<synchronous>, transform_indices = @transform_3, window_bounds = array<i64: 32, 128>}, {pipeline_mode = #tpu.pipeline_mode<synchronous>, transform_indices = @transform_4, window_bounds = array<i64: 1, 128>}, {pipeline_mode = #tpu.pipeline_mode<synchronous>, transform_indices = @transform_5, window_bounds = array<i64: 128, 128>}, {pipeline_mode = #tpu.pipeline_mode<synchronous>, transform_indices = @transform_6, window_bounds = array<i64: 1, 128>}, {transform_indices = @transform_7, window_bounds = array<i64: 1, 8, 128>}]} {
    %c0 = arith.constant 0 : index
    %c0_0 = arith.constant 0 : index
    %c0_1 = arith.constant 0 : index
    %0 = vector.load %arg2[%c0, %c0_0, %c0_1] : memref<1x8x32xbf16, #tpu.memory_space<vmem>>, vector<1x8x32xbf16>
    %1 = vector.shape_cast %0 : vector<1x8x32xbf16> to vector<8x32xbf16>
    %2 = arith.extf %1 : vector<8x32xbf16> to vector<8x32xf32>
    %c0_2 = arith.constant 0 : index
    %c0_3 = arith.constant 0 : index
    %c0_4 = arith.constant 0 : index
    %3 = vector.load %arg3[%c0_2, %c0_3, %c0_4] : memref<1x1x32xf32, #tpu.memory_space<vmem>>, vector<1x1x32xf32>
    %4 = vector.shape_cast %3 : vector<1x1x32xf32> to vector<1x32xf32>
    %c0_5 = arith.constant 0 : index
    %c0_6 = arith.constant 0 : index
    %c0_7 = arith.constant 0 : index
    %5 = vector.load %arg4[%c0_5, %c0_6, %c0_7] : memref<1x1x32xf32, #tpu.memory_space<vmem>>, vector<1x1x32xf32>
    %6 = vector.shape_cast %5 : vector<1x1x32xf32> to vector<1x32xf32>
    %cst = arith.constant dense<0.000000e+00> : vector<8xf32>
    %7 = vector.multi_reduction <add>, %2, %cst [1] : vector<8x32xf32> to vector<8xf32>
    %8 = vector.shape_cast %7 : vector<8xf32> to vector<8x1xf32>
    %9 = arith.mulf %2, %2 : vector<8x32xf32>
    %cst_8 = arith.constant dense<0.000000e+00> : vector<8xf32>
    %10 = vector.multi_reduction <add>, %9, %cst_8 [1] : vector<8x32xf32> to vector<8xf32>
    %11 = vector.shape_cast %10 : vector<8xf32> to vector<8x1xf32>
    %cst_9 = arith.constant 3.125000e-02 : f32
    %12 = vector.broadcast %cst_9 : f32 to vector<8x1xf32>
    %13 = arith.mulf %8, %12 : vector<8x1xf32>
    %cst_10 = arith.constant 3.125000e-02 : f32
    %14 = vector.broadcast %cst_10 : f32 to vector<8x1xf32>
    %15 = arith.mulf %11, %14 : vector<8x1xf32>
    %16 = arith.mulf %13, %13 : vector<8x1xf32>
    %17 = arith.subf %15, %16 : vector<8x1xf32>
    %cst_11 = arith.constant 0.000000e+00 : f32
    %18 = vector.broadcast %cst_11 : f32 to vector<8x1xf32>
    %19 = arith.maximumf %17, %18 : vector<8x1xf32>
    %20 = vector.broadcast %13 : vector<8x1xf32> to vector<8x32xf32>
    %21 = arith.subf %2, %20 : vector<8x32xf32>
    %cst_12 = arith.constant 9.99999974E-6 : f32
    %22 = vector.broadcast %cst_12 : f32 to vector<8x1xf32>
    %23 = arith.addf %19, %22 : vector<8x1xf32>
    %24 = math.rsqrt %23 : vector<8x1xf32>
    %25 = vector.broadcast %24 : vector<8x1xf32> to vector<8x32xf32>
    %26 = arith.mulf %21, %25 : vector<8x32xf32>
    %27 = vector.broadcast %6 : vector<1x32xf32> to vector<8x32xf32>
    %28 = arith.mulf %26, %27 : vector<8x32xf32>
    %29 = vector.broadcast %4 : vector<1x32xf32> to vector<8x32xf32>
    %30 = arith.addf %28, %29 : vector<8x32xf32>
    %cst_13 = arith.constant dense<0.000000e+00> : vector<8xf32>
    %31 = vector.multi_reduction <add>, %30, %cst_13 [1] : vector<8x32xf32> to vector<8xf32>
    %32 = vector.shape_cast %31 : vector<8xf32> to vector<8x1xf32>
    %33 = arith.mulf %30, %30 : vector<8x32xf32>
    %cst_14 = arith.constant dense<0.000000e+00> : vector<8xf32>
    %34 = vector.multi_reduction <add>, %33, %cst_14 [1] : vector<8x32xf32> to vector<8xf32>
    %35 = vector.shape_cast %34 : vector<8xf32> to vector<8x1xf32>
    %cst_15 = arith.constant 3.125000e-02 : f32
    %36 = vector.broadcast %cst_15 : f32 to vector<8x1xf32>
    %37 = arith.mulf %32, %36 : vector<8x1xf32>
    %cst_16 = arith.constant 3.125000e-02 : f32
    %38 = vector.broadcast %cst_16 : f32 to vector<8x1xf32>
    %39 = arith.mulf %35, %38 : vector<8x1xf32>
    %40 = arith.mulf %37, %37 : vector<8x1xf32>
    %41 = arith.subf %39, %40 : vector<8x1xf32>
    %cst_17 = arith.constant 0.000000e+00 : f32
    %42 = vector.broadcast %cst_17 : f32 to vector<8x1xf32>
    %43 = arith.maximumf %41, %42 : vector<8x1xf32>
    %44 = vector.broadcast %37 : vector<8x1xf32> to vector<8x32xf32>
    %45 = arith.subf %30, %44 : vector<8x32xf32>
    %cst_18 = arith.constant 9.99999974E-6 : f32
    %46 = vector.broadcast %cst_18 : f32 to vector<8x1xf32>
    %47 = arith.addf %43, %46 : vector<8x1xf32>
    %48 = math.rsqrt %47 : vector<8x1xf32>
    %49 = vector.broadcast %48 : vector<8x1xf32> to vector<8x32xf32>
    %50 = arith.mulf %45, %49 : vector<8x32xf32>
    %51 = arith.truncf %50 : vector<8x32xf32> to vector<8x32xbf16>
    %c0_19 = arith.constant 0 : index
    %c0_20 = arith.constant 0 : index
    %52 = vector.load %arg5[%c0_19, %c0_20] : memref<32x128xbf16, #tpu.memory_space<vmem>>, vector<32x128xbf16>
    %c0_21 = arith.constant 0 : index
    %c0_22 = arith.constant 0 : index
    %53 = vector.load %arg6[%c0_21, %c0_22] : memref<1x128xf32, #tpu.memory_space<vmem>>, vector<1x128xf32>
    %c0_23 = arith.constant 0 : index
    %c0_24 = arith.constant 0 : index
    %54 = vector.load %arg7[%c0_23, %c0_24] : memref<128x128xbf16, #tpu.memory_space<vmem>>, vector<128x128xbf16>
    %c0_25 = arith.constant 0 : index
    %c0_26 = arith.constant 0 : index
    %55 = vector.load %arg8[%c0_25, %c0_26] : memref<1x128xf32, #tpu.memory_space<vmem>>, vector<1x128xf32>
    %cst_27 = arith.constant dense<0.000000e+00> : vector<8x128xf32>
    %56 = tpu.matmul %51, %52, %cst_27 {dimension_numbers = #tpu.dot_dimension_numbers<[1], [0], [0], [1], [0, 0, 1, 1], [], []>} : vector<8x32xbf16>, vector<32x128xbf16>, vector<8x128xf32> -> vector<8x128xf32>
    %57 = vector.broadcast %53 : vector<1x128xf32> to vector<8x128xf32>
    %58 = arith.addf %56, %57 : vector<8x128xf32>
    %59 = arith.truncf %58 : vector<8x128xf32> to vector<8x128xbf16>
    %cst_28 = arith.constant 1.593750e+00 : bf16
    %60 = vector.broadcast %cst_28 : bf16 to vector<8x128xbf16>
    %61 = arith.mulf %60, %59 : vector<8x128xbf16>
    %62 = arith.mulf %59, %59 : vector<8x128xbf16>
    %63 = arith.mulf %62, %59 : vector<8x128xbf16>
    %cst_29 = arith.constant 7.128900e-02 : bf16
    %64 = vector.broadcast %cst_29 : bf16 to vector<8x128xbf16>
    %65 = arith.mulf %64, %63 : vector<8x128xbf16>
    %66 = arith.addf %61, %65 : vector<8x128xbf16>
    %67 = arith.negf %66 : vector<8x128xbf16>
    %68 = math.exp %67 : vector<8x128xbf16>
    %cst_30 = arith.constant 1.000000e+00 : bf16
    %69 = vector.broadcast %cst_30 : bf16 to vector<8x128xbf16>
    %70 = arith.addf %69, %68 : vector<8x128xbf16>
    %71 = arith.divf %69, %70 : vector<8x128xbf16>
    %72 = arith.mulf %59, %71 : vector<8x128xbf16>
    %73 = arith.extf %72 : vector<8x128xbf16> to vector<8x128xf32>
    %cst_31 = arith.constant dense<0.000000e+00> : vector<8xf32>
    %74 = vector.multi_reduction <add>, %73, %cst_31 [1] : vector<8x128xf32> to vector<8xf32>
    %75 = vector.shape_cast %74 : vector<8xf32> to vector<8x1xf32>
    %76 = arith.mulf %73, %73 : vector<8x128xf32>
    %cst_32 = arith.constant dense<0.000000e+00> : vector<8xf32>
    %77 = vector.multi_reduction <add>, %76, %cst_32 [1] : vector<8x128xf32> to vector<8xf32>
    %78 = vector.shape_cast %77 : vector<8xf32> to vector<8x1xf32>
    %cst_33 = arith.constant 7.812500e-03 : f32
    %79 = vector.broadcast %cst_33 : f32 to vector<8x1xf32>
    %80 = arith.mulf %75, %79 : vector<8x1xf32>
    %cst_34 = arith.constant 7.812500e-03 : f32
    %81 = vector.broadcast %cst_34 : f32 to vector<8x1xf32>
    %82 = arith.mulf %78, %81 : vector<8x1xf32>
    %83 = arith.mulf %80, %80 : vector<8x1xf32>
    %84 = arith.subf %82, %83 : vector<8x1xf32>
    %cst_35 = arith.constant 0.000000e+00 : f32
    %85 = vector.broadcast %cst_35 : f32 to vector<8x1xf32>
    %86 = arith.maximumf %84, %85 : vector<8x1xf32>
    %87 = vector.broadcast %80 : vector<8x1xf32> to vector<8x128xf32>
    %88 = arith.subf %73, %87 : vector<8x128xf32>
    %cst_36 = arith.constant 9.99999974E-6 : f32
    %89 = vector.broadcast %cst_36 : f32 to vector<8x1xf32>
    %90 = arith.addf %86, %89 : vector<8x1xf32>
    %91 = math.rsqrt %90 : vector<8x1xf32>
    %92 = vector.broadcast %91 : vector<8x1xf32> to vector<8x128xf32>
    %93 = arith.mulf %88, %92 : vector<8x128xf32>
    %94 = arith.truncf %93 : vector<8x128xf32> to vector<8x128xbf16>
    %cst_37 = arith.constant dense<0.000000e+00> : vector<8x128xf32>
    %95 = tpu.matmul %94, %54, %cst_37 {dimension_numbers = #tpu.dot_dimension_numbers<[1], [0], [0], [1], [0, 0, 1, 1], [], []>} : vector<8x128xbf16>, vector<128x128xbf16>, vector<8x128xf32> -> vector<8x128xf32>
    %96 = vector.broadcast %55 : vector<1x128xf32> to vector<8x128xf32>
    %97 = arith.addf %95, %96 : vector<8x128xf32>
    %c0_38 = arith.constant 0 : index
    %c0_39 = arith.constant 0 : index
    %c0_40 = arith.constant 0 : index
    %98 = vector.load %arg9[%c0_38, %c0_39, %c0_40] : memref<1x8x128xf32, #tpu.memory_space<vmem>>, vector<1x8x128xf32>
    %99 = vector.shape_cast %98 : vector<1x8x128xf32> to vector<8x128xf32>
    %100 = vector.shape_cast %97 : vector<8x128xf32> to vector<1x8x128xf32>
    tpu.vector_store %arg9[%c0_38, %c0_39, %c0_40], %100 {strides = array<i32>} : memref<1x8x128xf32, #tpu.memory_space<vmem>>, vector<1x8x128xf32>,
    return
  }
  func.func @transform_0(%arg0: i32, %arg1: i32) -> (i32, i32, i32) {
    %c0_i32 = arith.constant 0 : i32
    %c0_i32_0 = arith.constant 0 : i32
    return %arg0, %arg1, %c0_i32 : i32, i32, i32
  }
  func.func @transform_1(%arg0: i32, %arg1: i32) -> (i32, i32, i32) {
    %c0_i32 = arith.constant 0 : i32
    %c0_i32_0 = arith.constant 0 : i32
    %c0_i32_1 = arith.constant 0 : i32
    return %arg0, %c0_i32, %c0_i32_0 : i32, i32, i32
  }
  func.func @transform_2(%arg0: i32, %arg1: i32) -> (i32, i32, i32) {
    %c0_i32 = arith.constant 0 : i32
    %c0_i32_0 = arith.constant 0 : i32
    %c0_i32_1 = arith.constant 0 : i32
    return %arg0, %c0_i32, %c0_i32_0 : i32, i32, i32
  }
  func.func @transform_3(%arg0: i32, %arg1: i32) -> (i32, i32) {
    %c0_i32 = arith.constant 0 : i32
    %c0_i32_0 = arith.constant 0 : i32
    %c0_i32_1 = arith.constant 0 : i32
    return %c0_i32, %c0_i32_0 : i32, i32
  }
  func.func @transform_4(%arg0: i32, %arg1: i32) -> (i32, i32) {
    %c0_i32 = arith.constant 0 : i32
    %c0_i32_0 = arith.constant 0 : i32
    %c0_i32_1 = arith.constant 0 : i32
    return %c0_i32, %c0_i32_0 : i32, i32
  }
  func.func @transform_5(%arg0: i32, %arg1: i32) -> (i32, i32) {
    %c0_i32 = arith.constant 0 : i32
    %c0_i32_0 = arith.constant 0 : i32
    %c0_i32_1 = arith.constant 0 : i32
    return %c0_i32, %c0_i32_0 : i32, i32
  }
  func.func @transform_6(%arg0: i32, %arg1: i32) -> (i32, i32) {
    %c0_i32 = arith.constant 0 : i32
    %c0_i32_0 = arith.constant 0 : i32
    %c0_i32_1 = arith.constant 0 : i32
    return %c0_i32, %c0_i32_0 : i32, i32
  }
  func.func @transform_7(%arg0: i32, %arg1: i32) -> (i32, i32, i32) {
    %c0_i32 = arith.constant 0 : i32
    %c0_i32_0 = arith.constant 0 : i32
    return %arg0, %arg1, %c0_i32 : i32, i32, i32
  }
}

</mosaic_0001>

<llo_original>
// kernel: tpu_custom_call.1
$region0: #{tpu_custom_call.1}
  #allocation0 [shape = 'u32[]', space=smem, size = 0x4, offset = 0x4, fixed_abs, tag = 'smem constant byte address 0x4 - core index']
  #allocation1 [shape = 'u32[144,128]{1,0:T(1,128)}', space=vmem, size = 0x12000, scoped, tag = 'internal scratch']
  %s0 = inlined_call_operand.hbm [shape: bf16[2,8,32], index: 0, kind: input, shape index: {}]
  %s1 = inlined_call_operand.vmem [shape: f32[2,1,32], index: 1, kind: input, shape index: {}]
  %s2 = inlined_call_operand.vmem [shape: f32[2,1,32], index: 2, kind: input, shape index: {}]
  %s3 = inlined_call_operand.hbm [shape: bf16[32,128], index: 3, kind: input, shape index: {}]
  %s4 = inlined_call_operand.vmem [shape: f32[1,128], index: 4, kind: input, shape index: {}]
  %s5 = inlined_call_operand.hbm [shape: bf16[128,128], index: 5, kind: input, shape index: {}]
  %s6 = inlined_call_operand.vmem [shape: f32[1,128], index: 6, kind: input, shape index: {}]
  %s7 = inlined_call_operand.hbm [shape: f32[2,8,128], index: 7, kind: output, shape index: {}]
  %s8 = sld [smem:[#allocation0]]
  $region73: #{tpu_custom_call.1} parent=0
    _
  %s10 = ssub.s32 1, %s8
  %s11 = scalar_select 0, %s10, %s8
  $region1: #{tpu_custom_call.1} parent=0
    #allocation2 [shape = 'u8[4096]{0}', space=vmem, size = 0x1000, scoped, tag = 'input window, operand 0']
    #allocation3 [shape = 's32[2]{0}', space=sflag, size = 0x8, scoped, tag = 'scoped memory for tpu_custom_call.1']
    #allocation4 [shape = 's32[2]{0}', space=sflag, size = 0x8, scoped, tag = 'scoped memory for tpu_custom_call.1']
    #allocation5 [shape = 'u8[8192]{0}', space=vmem, size = 0x2000, scoped, tag = 'input window, operand 3, single buffered']
    #allocation6 [shape = 's32[1]{0}', space=sflag, size = 0x4, scoped, tag = 'scoped memory for tpu_custom_call.1']
    #allocation7 [shape = 'u8[32768]{0}', space=vmem, size = 0x8000, scoped, tag = 'input window, operand 5, single buffered']
    #allocation8 [shape = 'u8[8192]{0}', space=vmem, size = 0x2000, scoped, tag = 'output window, operand 0']
    %12 = vsyncpa [#allocation3], 0
    %s13 = scalar_lea.sflag [#allocation3], 1
    %14 = vsyncpa %s13, 0
    %15 = vsyncpa [#allocation6], 0
    %16 = vsyncpa [#allocation4], 0
    %s17 = scalar_lea.sflag [#allocation4], 1
    %18 = vsyncpa %s17, 0
    loop: start=0, step=1, limit=4
    $region2: #{tpu_custom_call.1} parent=1 // loop_pre_header
      _
    $region3: #{tpu_custom_call.1} parent=1 // loop_header
      %s20 = sphi 0, %s24
      %p21 = scmp.ge.s32.totalorder %s20, 4
      %s27 = sphi 0, %s39
      %s28 = sphi 0, %s35
      %s29 = sphi 0, %s27
      %s30 = sphi 0, %s28
      %s31 = sphi 0, %s29
      %s32 = sphi 0, %s30
      %s44 = sphi 0, %s46
      %s47 = sphi 0, %s44
      %s48 = sphi 0, %s47
      %s64 = sphi 0, %s48
      %s70 = sphi 0, %s72
      %s73 = sphi 0, %s70
      %s74 = sphi 0, %s73
      %s90 = sphi 0, %s74
      %s96 = sphi 0, %s98
      %s99 = sphi 0, %s96
      %s100 = sphi 0, %s99
      %s116 = sphi 0, %s100
      %s120 = sphi 0, %s120
      %s122 = sphi 0, %s120
      %s123 = sphi 0, %s122
      %s137 = sphi 0, %s123
      %s141 = sphi 0, %s141
      %s143 = sphi 0, %s141
      %s144 = sphi 0, %s143
      %s158 = sphi 0, %s144
      %s162 = sphi 0, %s162
      %s164 = sphi 0, %s162
      %s165 = sphi 0, %s164
      %s179 = sphi 0, %s165
      %s183 = sphi 0, %s183
      %s185 = sphi 0, %s183
      %s186 = sphi 0, %s185
      %s200 = sphi 0, %s186
      %s208 = sphi 0, %s210
      %s211 = sphi 0, %s208
      %s212 = sphi 0, %s211
      %s228 = sphi 0, %s212
    $region4: #{tpu_custom_call.1} parent=1 // loop_header_branch
      %23 = sbr.rel (%p21) target = $region8
    $region5: #{tpu_custom_call.1} parent=1 // loop_body
      %s25 = ssub.s32 %s20, 1
      %s26 = ssub.s32 %s20, 2
      %s33 = sadd.s32 1, %s28
      %p34 = scmp.ge.s32.totalorder %s33, 1
      %s35 = scalar_select %p34, 0, %s33
      %s36 = sadd.s32 1, %s27
      %s37 = scalar_select %p34, %s36, %s27
      %p38 = scmp.ge.s32.totalorder %s37, 2
      %s39 = scalar_select %p38, 0, %s37
      %s40 = ssub.s32 %s27, %s39
      %s41 = ssub.s32 %s28, %s35
      %s42 = sor.u32 %s40, %s41
      %p43 = scmp.eq.s32.totalorder %s42, 0
      %s45 = sadd.s32 %s44, 1
      %s46 = scalar_select %p43, %s44, %s45
      %p49 = pneg %p43
      %p50 = scmp.eq.s32.totalorder %s20, 1
      %p51 = por %p49, %p50
      %p52 = scmp.ne.s32.totalorder %s44, %s47
      %p53 = scmp.eq.s32.totalorder %s20, 0
      %p54 = por %p52, %p53
      %p55 = scmp.ne.s32.totalorder %s44, %s47
      %p56 = scmp.eq.s32.totalorder %s25, 1
      %p57 = por %p55, %p56
      %p58 = scmp.ne.s32.totalorder %s47, %s48
      %p59 = scmp.eq.s32.totalorder %s25, 0
      %p60 = por %p58, %p59
      %p61 = scmp.ne.s32.totalorder %s47, %s48
      %p62 = scmp.eq.s32.totalorder %s26, 1
      %p63 = por %p61, %p62
      %p65 = scmp.ne.s32.totalorder %s48, %s64
      %p66 = scmp.eq.s32.totalorder %s26, 0
      %p67 = por %p65, %p66
      %s68 = ssub.s32 %s27, %s39
      %p69 = scmp.eq.s32.totalorder %s68, 0
      %s71 = sadd.s32 %s70, 1
      %s72 = scalar_select %p69, %s70, %s71
      %p75 = pneg %p69
      %p76 = scmp.eq.s32.totalorder %s20, 1
      %p77 = por %p75, %p76
      %p78 = scmp.ne.s32.totalorder %s70, %s73
      %p79 = scmp.eq.s32.totalorder %s20, 0
      %p80 = por %p78, %p79
      %p81 = scmp.ne.s32.totalorder %s70, %s73
      %p82 = scmp.eq.s32.totalorder %s25, 1
      %p83 = por %p81, %p82
      %p84 = scmp.ne.s32.totalorder %s73, %s74
      %p85 = scmp.eq.s32.totalorder %s25, 0
      %p86 = por %p84, %p85
      %p87 = scmp.ne.s32.totalorder %s73, %s74
      %p88 = scmp.eq.s32.totalorder %s26, 1
      %p89 = por %p87, %p88
      %p91 = scmp.ne.s32.totalorder %s74, %s90
      %p92 = scmp.eq.s32.totalorder %s26, 0
      %p93 = por %p91, %p92
      %s94 = ssub.s32 %s27, %s39
      %p95 = scmp.eq.s32.totalorder %s94, 0
      %s97 = sadd.s32 %s96, 1
      %s98 = scalar_select %p95, %s96, %s97
      %p101 = pneg %p95
      %p102 = scmp.eq.s32.totalorder %s20, 1
      %p103 = por %p101, %p102
      %p104 = scmp.ne.s32.totalorder %s96, %s99
      %p105 = scmp.eq.s32.totalorder %s20, 0
      %p106 = por %p104, %p105
      %p107 = scmp.ne.s32.totalorder %s96, %s99
      %p108 = scmp.eq.s32.totalorder %s25, 1
      %p109 = por %p107, %p108
      %p110 = scmp.ne.s32.totalorder %s99, %s100
      %p111 = scmp.eq.s32.totalorder %s25, 0
      %p112 = por %p110, %p111
      %p113 = scmp.ne.s32.totalorder %s99, %s100
      %p114 = scmp.eq.s32.totalorder %s26, 1
      %p115 = por %p113, %p114
      %p117 = scmp.ne.s32.totalorder %s100, %s116
      %p118 = scmp.eq.s32.totalorder %s26, 0
      %p119 = por %p117, %p118
      %s121 = sadd.s32 %s120, 1
      %p124 = scmp.eq.s32.totalorder %s20, 1
      %p125 = scmp.ne.s32.totalorder %s120, %s122
      %p126 = scmp.eq.s32.totalorder %s20, 0
      %p127 = por %p125, %p126
      %p128 = scmp.ne.s32.totalorder %s120, %s122
      %p129 = scmp.eq.s32.totalorder %s25, 1
      %p130 = por %p128, %p129
      %p131 = scmp.ne.s32.totalorder %s122, %s123
      %p132 = scmp.eq.s32.totalorder %s25, 0
      %p133 = por %p131, %p132
      %p134 = scmp.ne.s32.totalorder %s122, %s123
      %p135 = scmp.eq.s32.totalorder %s26, 1
      %p136 = por %p134, %p135
      %p138 = scmp.ne.s32.totalorder %s123, %s137
      %p139 = scmp.eq.s32.totalorder %s26, 0
      %p140 = por %p138, %p139
      %s142 = sadd.s32 %s141, 1
      %p145 = scmp.eq.s32.totalorder %s20, 1
      %p146 = scmp.ne.s32.totalorder %s141, %s143
      %p147 = scmp.eq.s32.totalorder %s20, 0
      %p148 = por %p146, %p147
      %p149 = scmp.ne.s32.totalorder %s141, %s143
      %p150 = scmp.eq.s32.totalorder %s25, 1
      %p151 = por %p149, %p150
      %p152 = scmp.ne.s32.totalorder %s143, %s144
      %p153 = scmp.eq.s32.totalorder %s25, 0
      %p154 = por %p152, %p153
      %p155 = scmp.ne.s32.totalorder %s143, %s144
      %p156 = scmp.eq.s32.totalorder %s26, 1
      %p157 = por %p155, %p156
      %p159 = scmp.ne.s32.totalorder %s144, %s158
      %p160 = scmp.eq.s32.totalorder %s26, 0
      %p161 = por %p159, %p160
      %s163 = sadd.s32 %s162, 1
      %p166 = scmp.eq.s32.totalorder %s20, 1
      %p167 = scmp.ne.s32.totalorder %s162, %s164
      %p168 = scmp.eq.s32.totalorder %s20, 0
      %p169 = por %p167, %p168
      %p170 = scmp.ne.s32.totalorder %s162, %s164
      %p171 = scmp.eq.s32.totalorder %s25, 1
      %p172 = por %p170, %p171
      %p173 = scmp.ne.s32.totalorder %s164, %s165
      %p174 = scmp.eq.s32.totalorder %s25, 0
      %p175 = por %p173, %p174
      %p176 = scmp.ne.s32.totalorder %s164, %s165
      %p177 = scmp.eq.s32.totalorder %s26, 1
      %p178 = por %p176, %p177
      %p180 = scmp.ne.s32.totalorder %s165, %s179
      %p181 = scmp.eq.s32.totalorder %s26, 0
      %p182 = por %p180, %p181
      %s184 = sadd.s32 %s183, 1
      %p187 = scmp.eq.s32.totalorder %s20, 1
      %p188 = scmp.ne.s32.totalorder %s183, %s185
      %p189 = scmp.eq.s32.totalorder %s20, 0
      %p190 = por %p188, %p189
      %p191 = scmp.ne.s32.totalorder %s183, %s185
      %p192 = scmp.eq.s32.totalorder %s25, 1
      %p193 = por %p191, %p192
      %p194 = scmp.ne.s32.totalorder %s185, %s186
      %p195 = scmp.eq.s32.totalorder %s25, 0
      %p196 = por %p194, %p195
      %p197 = scmp.ne.s32.totalorder %s185, %s186
      %p198 = scmp.eq.s32.totalorder %s26, 1
      %p199 = por %p197, %p198
      %p201 = scmp.ne.s32.totalorder %s186, %s200
      %p202 = scmp.eq.s32.totalorder %s26, 0
      %p203 = por %p201, %p202
      %s204 = ssub.s32 %s27, %s39
      %s205 = ssub.s32 %s28, %s35
      %s206 = sor.u32 %s204, %s205
      %p207 = scmp.eq.s32.totalorder %s206, 0
      %s209 = sadd.s32 %s208, 1
      %s210 = scalar_select %p207, %s208, %s209
      %p213 = pneg %p207
      %p214 = scmp.eq.s32.totalorder %s20, 1
      %p215 = por %p213, %p214
      %p216 = scmp.ne.s32.totalorder %s208, %s211
      %p217 = scmp.eq.s32.totalorder %s20, 0
      %p218 = por %p216, %p217
      %p219 = scmp.ne.s32.totalorder %s208, %s211
      %p220 = scmp.eq.s32.totalorder %s25, 1
      %p221 = por %p219, %p220
      %p222 = scmp.ne.s32.totalorder %s211, %s212
      %p223 = scmp.eq.s32.totalorder %s25, 0
      %p224 = por %p222, %p223
      %p225 = scmp.ne.s32.totalorder %s211, %s212
      %p226 = scmp.eq.s32.totalorder %s26, 1
      %p227 = por %p225, %p226
      %p229 = scmp.ne.s32.totalorder %s212, %s228
      %p230 = scmp.eq.s32.totalorder %s26, 0
      %p231 = por %p229, %p230
      %p232 = scmp.le.s32.totalorder 1, %s20
      %p233 = scmp.lt.s32.totalorder %s20, 3
      %p234 = pnand %p232, %p233
      %p235 = pneg %p234
      // Predicated region
      $region9: #{tpu_custom_call.1} parent=5 // pred_check
        _
      $region10: #{tpu_custom_call.1} parent=5 // pred_check_branch
        %237 = sbr.rel (%p234) target = $region12
      $region11: #{tpu_custom_call.1} parent=5 // pred_region
        %s238 = ssub.s32 %s20, 1
        // Predicated region
        $region13: #{tpu_custom_call.1} parent=11 // pred_check
          %p239 = pneg %p133
        $region14: #{tpu_custom_call.1} parent=11 // pred_check_branch
          %241 = sbr.rel (%p239) target = $region16
        $region15: #{tpu_custom_call.1} parent=11 // pred_region
          %s243 = ssub.s32 256, 256
          %244 = vsyncadd [#allocation6], %s243
          %s245 = sshll.u32 [#allocation5], 4
          %s246 = int_to_ptr.vmem [resolvable:$true] %s245
          %251 = dma.hbm_to_vmem [thread:$0]  %s3, 256, %s246, [#allocation6], 64, 64, 4
        $region16: #{tpu_custom_call.1} parent=11 // pred_fallthru
          _
        // Predicated region
        $region17: #{tpu_custom_call.1} parent=11 // pred_check
          %p252 = pneg %p154
        $region18: #{tpu_custom_call.1} parent=11 // pred_check_branch
          %254 = sbr.rel (%p252) target = $region20
        $region19: #{tpu_custom_call.1} parent=11 // pred_region
          _
        $region20: #{tpu_custom_call.1} parent=11 // pred_fallthru
          _
        // Predicated region
        $region21: #{tpu_custom_call.1} parent=11 // pred_check
          %p255 = pneg %p175
        $region22: #{tpu_custom_call.1} parent=11 // pred_check_branch
          %257 = sbr.rel (%p255) target = $region24
        $region23: #{tpu_custom_call.1} parent=11 // pred_region
          %s259 = ssub.s32 1024, 1024
          %260 = vsyncadd [#allocation6], %s259
          %s261 = sshll.u32 [#allocation7], 4
          %s262 = int_to_ptr.vmem [resolvable:$true] %s261
          %267 = dma.hbm_to_vmem [thread:$0]  %s5, 1024, %s262, [#allocation6], 64, 64, 4
        $region24: #{tpu_custom_call.1} parent=11 // pred_fallthru
          _
        // Predicated region
        $region25: #{tpu_custom_call.1} parent=11 // pred_check
          %p268 = pneg %p196
        $region26: #{tpu_custom_call.1} parent=11 // pred_check_branch
          %270 = sbr.rel (%p268) target = $region28
        $region27: #{tpu_custom_call.1} parent=11 // pred_region
          _
        $region28: #{tpu_custom_call.1} parent=11 // pred_fallthru
          _
      $region12: #{tpu_custom_call.1} parent=5 // pred_fallthru
        _
      %p271 = scmp.lt.s32.totalorder %s20, 2
      // Predicated region
      $region29: #{tpu_custom_call.1} parent=5 // pred_check
        %p272 = pneg %p271
      $region30: #{tpu_custom_call.1} parent=5 // pred_check_branch
        %274 = sbr.rel (%p272) target = $region32
      $region31: #{tpu_custom_call.1} parent=5 // pred_region
        // Predicated region
        $region33: #{tpu_custom_call.1} parent=31 // pred_check
          %p275 = pneg %p54
        $region34: #{tpu_custom_call.1} parent=31 // pred_check_branch
          %277 = sbr.rel (%p275) target = $region36
        $region35: #{tpu_custom_call.1} parent=31 // pred_region
          %s278 = sand.u32 %s44, 1
          %s279 = scalar_lea.sflag [#allocation3], %s278
          %s280 = sand.u32 %s44, 1
          %s281 = smul.addr %s280, 4
          %s282 = scalar_lea.vmem [#allocation2], %s281
          %s284 = ssub.s32 64, 64
          %285 = vsyncadd %s279, %s284
          %s286 = sadd.s32 %s28, %s27
          %s287 = smul.addr %s286, 64
          %s288 = scalar_lea.hbm %s0, %s287
          %s290 = sshll.u32 %s282, 4
          %s291 = int_to_ptr.vmem [resolvable:$true] %s290
          %293 = dma.hbm_to_vmem [thread:$0]  %s288, 64, %s291, %s279
        $region36: #{tpu_custom_call.1} parent=31 // pred_fallthru
          _
        // Predicated region
        $region37: #{tpu_custom_call.1} parent=31 // pred_check
          %p294 = pneg %p80
        $region38: #{tpu_custom_call.1} parent=31 // pred_check_branch
          %296 = sbr.rel (%p294) target = $region40
        $region39: #{tpu_custom_call.1} parent=31 // pred_region
          %p297 = scmp.lt.s32.totalorder %s27, 1
          %s298 = scalar_select %p297, %s27, 1
          %s299 = scalar_lea.vmem %s1, %s298
        $region40: #{tpu_custom_call.1} parent=31 // pred_fallthru
          _
        // Predicated region
        $region41: #{tpu_custom_call.1} parent=31 // pred_check
          %p300 = pneg %p106
        $region42: #{tpu_custom_call.1} parent=31 // pred_check_branch
          %302 = sbr.rel (%p300) target = $region44
        $region43: #{tpu_custom_call.1} parent=31 // pred_region
          %p303 = scmp.lt.s32.totalorder %s27, 1
          %s304 = scalar_select %p303, %s27, 1
          %s305 = scalar_lea.vmem %s2, %s304
        $region44: #{tpu_custom_call.1} parent=31 // pred_fallthru
          _
      $region32: #{tpu_custom_call.1} parent=5 // pred_fallthru
        _
      %p306 = scmp.le.s32.totalorder 1, %s20
      %p307 = scmp.lt.s32.totalorder %s20, 3
      %p308 = pnand %p306, %p307
      %p309 = pneg %p308
      // Predicated region
      $region45: #{tpu_custom_call.1} parent=5 // pred_check
        _
      $region46: #{tpu_custom_call.1} parent=5 // pred_check_branch
        %311 = sbr.rel (%p308) target = $region48
      $region47: #{tpu_custom_call.1} parent=5 // pred_region
        %s312 = ssub.s32 %s20, 1
        %s313 = sand.u32 %s47, 1
        %s314 = scalar_lea.sflag [#allocation3], %s313
        %s315 = sand.u32 %s47, 1
        %s316 = smul.addr %s315, 4
        %s317 = scalar_lea.vmem [#allocation2], %s316
        // Predicated region
        $region49: #{tpu_custom_call.1} parent=47 // pred_check
          %p318 = pneg %p60
        $region50: #{tpu_custom_call.1} parent=47 // pred_check_branch
          %320 = sbr.rel (%p318) target = $region52
        $region51: #{tpu_custom_call.1} parent=47 // pred_region
          %321 = dma.done %s314, 64
        $region52: #{tpu_custom_call.1} parent=47 // pred_fallthru
          _
        // Predicated region
        $region53: #{tpu_custom_call.1} parent=47 // pred_check
          %p322 = pneg %p133
        $region54: #{tpu_custom_call.1} parent=47 // pred_check_branch
          %324 = sbr.rel (%p322) target = $region56
        $region55: #{tpu_custom_call.1} parent=47 // pred_region
          %325 = dma.done [#allocation6], 256
        $region56: #{tpu_custom_call.1} parent=47 // pred_fallthru
          _
        // Predicated region
        $region57: #{tpu_custom_call.1} parent=47 // pred_check
          %p326 = pneg %p175
        $region58: #{tpu_custom_call.1} parent=47 // pred_check_branch
          %328 = sbr.rel (%p326) target = $region60
        $region59: #{tpu_custom_call.1} parent=47 // pred_region
          %329 = dma.done [#allocation6], 1024
        $region60: #{tpu_custom_call.1} parent=47 // pred_fallthru
          _
        %s330 = sand.u32 %s47, 1
        %s331 = scalar_lea.sflag [#allocation3], %s330
        %s332 = sand.u32 %s47, 1
        %s333 = smul.addr %s332, 4
        %s334 = scalar_lea.vmem [#allocation2], %s333
        %p335 = pneg %p60
        %p336 = pneg %p57
        %p337 = scmp.lt.s32.totalorder %s29, 1
        %s338 = scalar_select %p337, %s29, 1
        %s339 = scalar_lea.vmem %s1, %s338
        %p340 = pneg %p86
        %p341 = pneg %p83
        %p342 = scmp.lt.s32.totalorder %s29, 1
        %s343 = scalar_select %p342, %s29, 1
        %s344 = scalar_lea.vmem %s2, %s343
        %p345 = pneg %p112
        %p346 = pneg %p109
        %p347 = pneg %p133
        %p348 = pneg %p130
        %p349 = pneg %p154
        %p350 = pneg %p151
        %p351 = pneg %p175
        %p352 = pneg %p172
        %p353 = pneg %p196
        %p354 = pneg %p193
        %p355 = pneg %p224
        %p356 = pneg %p221
        %s357 = sand.u32 %s211, 1
        %s358 = scalar_lea.sflag [#allocation4], %s357
        %s359 = sand.u32 %s211, 1
        %s360 = smul.addr %s359, 8
        %s361 = scalar_lea.vmem [#allocation8], %s360
        %p362 = scmp.lt.s32.totalorder %s29, 1
        %s363 = scalar_select %p362, %s29, 1
        %s364 = scalar_lea.vmem %s1, %s363
        %p365 = scmp.lt.s32.totalorder %s29, 1
        %s366 = scalar_select %p365, %s29, 1
        %s367 = scalar_lea.vmem %s2, %s366
        %v372 = vld [vmem:[%s317] sm:$0xf]
        %v373 = vunpack.c.l.bf16 %v372
        %v374 = vld [vmem:[%s364] sm:$0x1]
        %v375 = vld [vmem:[%s367] sm:$0x1]
        %vm376 = vcmask 261120
        %v377 = vsel %vm376, %v373, 0.0
        %378 = vadd.xlane.f32.xlu0 %v377
        %v379 = vpop.xlane.xlu0 %378
        %v380 = vmul.f32 %v373, %v373
        %v381 = vsel %vm376, %v380, 0.0
        %382 = vadd.xlane.f32.xlu0 %v381
        %v383 = vpop.xlane.xlu0 %382
        %v384 = vmul.f32 %v379, 0.03125
        %v385 = vmul.f32 %v383, 0.03125
        %v386 = vmul.f32 %v384, %v384
        %v387 = vsub.f32 %v385, %v386
        %v388 = vmax.f32 %v387, 0.0
        %v389 = vsub.f32 %v373, %v384
        %v390 = vadd.f32 %v388, 1e-05
        %v391 = vrsqrt.pop %v390
        %v392 = vmul.f32 %v389, %v391
        %v394 = vlaneseq
        %v395 = vshrl.u32 %v394, 7
        %v396 = vsub.s32 0, %v395
        %v397 = vrot.slane %v375, %v396
        %v399 = vmul.f32 %v392, %v397
        %v401 = vlaneseq
        %v402 = vshrl.u32 %v401, 7
        %v403 = vsub.s32 0, %v402
        %v404 = vrot.slane %v374, %v403
        %v406 = vadd.f32 %v399, %v404
        %v407 = vsel %vm376, %v406, 0.0
        %408 = vadd.xlane.f32.xlu0 %v407
        %v409 = vpop.xlane.xlu0 %408
        %v410 = vmul.f32 %v406, %v406
        %v411 = vsel %vm376, %v410, 0.0
        %412 = vadd.xlane.f32.xlu0 %v411
        %v413 = vpop.xlane.xlu0 %412
        %v414 = vmul.f32 %v409, 0.03125
        %v415 = vmul.f32 %v413, 0.03125
        %v416 = vmul.f32 %v414, %v414
        %v417 = vsub.f32 %v415, %v416
        %v418 = vmax.f32 %v417, 0.0
        %v419 = vsub.f32 %v406, %v414
        %v420 = vadd.f32 %v418, 1e-05
        %v421 = vrsqrt.pop %v420
        %v422 = vmul.f32 %v419, %v421
        %v423 = vpack.c.bf16 %v422, %v422
        %v424 = vld [vmem:[#allocation5] sm:$0xf]
        %v425 = vld [vmem:[#allocation5 + $0x4] sm:$0xf]
        %v426 = vld [vmem:[#allocation5 + $0x8] sm:$0xf]
        %v427 = vld [vmem:[#allocation5 + $0xc] sm:$0xf]
        %v428 = vld [vmem:[%s4] sm:$0x1]
        %v429 = vld [vmem:[#allocation7] sm:$0xf]
        %v430 = vld [vmem:[#allocation7 + $0x4] sm:$0xf]
        %v431 = vld [vmem:[#allocation7 + $0x8] sm:$0xf]
        %v432 = vld [vmem:[#allocation7 + $0xc] sm:$0xf]
        %v433 = vld [vmem:[#allocation7 + $0x10] sm:$0xf]
        %v434 = vld [vmem:[#allocation7 + $0x14] sm:$0xf]
        %v435 = vld [vmem:[#allocation7 + $0x18] sm:$0xf]
        %v436 = vld [vmem:[#allocation7 + $0x1c] sm:$0xf]
        %v437 = vld [vmem:[#allocation7 + $0x20] sm:$0xf]
        %v438 = vld [vmem:[#allocation7 + $0x24] sm:$0xf]
        %v439 = vld [vmem:[#allocation7 + $0x28] sm:$0xf]
        %v440 = vld [vmem:[#allocation7 + $0x2c] sm:$0xf]
        %v441 = vld [vmem:[#allocation7 + $0x30] sm:$0xf]
        %v442 = vld [vmem:[#allocation7 + $0x34] sm:$0xf]
        %v443 = vld [vmem:[#allocation7 + $0x38] sm:$0xf]
        %v444 = vld [vmem:[#allocation7 + $0x3c] sm:$0xf]
        %v445 = vld [vmem:[%s6] sm:$0x1]
        %v447 = vlaneseq
        %v448 = vshrl.u32 %v447, 7
        %v449 = vsub.s32 0, %v448
        %v450 = vrot.slane %v428, %v449
        %v456 = vunpack.c.l.b16 %v424
        %v457 = vunpack.c.l.b16 %v425
        %v458 = vunpack.c.l.b16 %v426
        %v459 = vunpack.c.l.b16 %v427
        %v460 = vpack.c.b16 %v457, %v456
        %v461 = vpack.c.b16 %v459, %v458
        %v465 = vsel %vm376, %v423, 0
        %467 = vmatprep.subr.bf16.mxu0 0
        %468 = vmatpush1.bf16.msra.mxu0 %v460
        %469 = vmatprep.subr.bf16.mxu0 0
        %470 = vmatpush1.bf16.msra.mxu0 %v461
        %471 = vmatprep.subr.bf16.mxu0 0
        %472 = vmatpush1.bf16.msra.mxu0 0
        %473 = vmatprep.subr.bf16.mxu0 0
        %474 = vmatpush1.bf16.msra.mxu0 0
        %475 = vmatprep.subr.bf16.mxu0 0
        %476 = vmatpush1.bf16.msra.mxu0 0
        %477 = vmatprep.subr.bf16.mxu0 0
        %478 = vmatpush1.bf16.msra.mxu0 0
        %479 = vmatprep.subr.bf16.mxu0 0
        %480 = vmatpush1.bf16.msra.mxu0 0
        %481 = vmatprep.subr.bf16.mxu0 0
        %482 = vmatpush1.bf16.msra.mxu0 0
        %483 = vmatprep.subr.bf16.mxu0 0
        %484 = vmatpush1.bf16.msra.mxu0 0
        %485 = vmatprep.subr.bf16.mxu0 0
        %486 = vmatpush1.bf16.msra.mxu0 0
        %487 = vmatprep.subr.bf16.mxu0 0
        %488 = vmatpush1.bf16.msra.mxu0 0
        %489 = vmatprep.subr.bf16.mxu0 0
        %490 = vmatpush1.bf16.msra.mxu0 0
        %491 = vmatprep.subr.bf16.mxu0 0
        %492 = vmatpush1.bf16.msra.mxu0 0
        %493 = vmatprep.subr.bf16.mxu0 0
        %494 = vmatpush1.bf16.msra.mxu0 0
        %495 = vmatprep.subr.bf16.mxu0 0
        %496 = vmatpush1.bf16.msra.mxu0 0
        %497 = vmatprep.subr.bf16.mxu0 0
        %498 = vmatpush1.bf16.msra.mxu0 0
        %499 = vmatprep.mubr.bf16.mxu0 0
        %500 = vmatmul.mubr.bf16.gmra.mrb[0].mxu0 %v465
        %v501 = vpop.f32.mrb[0].mxu0
        %v502 = vadd.f32 %v450, %v501
        %v503 = vpop.f32.mrb[0].mxu0
        %v504 = vpop.f32.mrb[0].mxu0
        %v505 = vpop.f32.mrb[0].mxu0
        %506 = vdwg.mxu0
        %v507 = vpack.c.bf16 %v502, %v502
        %v508 = vmul.bf16 %v507, 1070350284
        %v509 = vmul.bf16 %v507, %v507
        %v510 = vmul.bf16 %v509, %v507
        %v511 = vmul.bf16 %v510, 1032994194
        %v512 = vadd.bf16 %v508, %v511
        %v513 = vxor.u32 %v512, 2147516416
        %v515 = vmul.bf16 %v513, 1069105081
        %v516 = vpow.bf16.pop %v515
        %v517 = vadd.bf16 %v516, 1065369472
        %v518 = vrcp.bf16.pop %v517
        %v519 = vmul.bf16 1065369472, %v518
        %v520 = vmul.bf16 %v507, %v519
        %v521 = vunpack.c.l.bf16 %v520
        %522 = vadd.xlane.f32.xlu0 %v521
        %v523 = vpop.xlane.xlu0 %522
        %v524 = vmul.f32 %v521, %v521
        %525 = vadd.xlane.f32.xlu0 %v524
        %v526 = vpop.xlane.xlu0 %525
        %v527 = vmul.f32 %v523, 0.0078125
        %v528 = vmul.f32 %v526, 0.0078125
        %v529 = vmul.f32 %v527, %v527
        %v530 = vsub.f32 %v528, %v529
        %v531 = vmax.f32 %v530, 0.0
        %v532 = vsub.f32 %v521, %v527
        %v533 = vadd.f32 %v531, 1e-05
        %v534 = vrsqrt.pop %v533
        %v535 = vmul.f32 %v532, %v534
        %v536 = vpack.c.bf16 %v535, %v535
        %v538 = vlaneseq
        %v539 = vshrl.u32 %v538, 7
        %v540 = vsub.s32 0, %v539
        %v541 = vrot.slane %v445, %v540
        %v559 = vunpack.c.l.b16 %v429
        %v560 = vunpack.c.l.b16 %v430
        %v561 = vunpack.c.l.b16 %v431
        %v562 = vunpack.c.l.b16 %v432
        %v563 = vunpack.c.l.b16 %v433
        %v564 = vunpack.c.l.b16 %v434
        %v565 = vunpack.c.l.b16 %v435
        %v566 = vunpack.c.l.b16 %v436
        %v567 = vunpack.c.l.b16 %v437
        %v568 = vunpack.c.l.b16 %v438
        %v569 = vunpack.c.l.b16 %v439
        %v570 = vunpack.c.l.b16 %v440
        %v571 = vunpack.c.l.b16 %v441
        %v572 = vunpack.c.l.b16 %v442
        %v573 = vunpack.c.l.b16 %v443
        %v574 = vunpack.c.l.b16 %v444
        %v575 = vpack.c.b16 %v560, %v559
        %v576 = vpack.c.b16 %v562, %v561
        %v577 = vpack.c.b16 %v564, %v563
        %v578 = vpack.c.b16 %v566, %v565
        %v579 = vpack.c.b16 %v568, %v567
        %v580 = vpack.c.b16 %v570, %v569
        %v581 = vpack.c.b16 %v572, %v571
        %v582 = vpack.c.b16 %v574, %v573
        %591 = vmatprep.subr.bf16.mxu0 0
        %592 = vmatpush1.bf16.msra.mxu0 %v575
        %593 = vmatprep.subr.bf16.mxu0 0
        %594 = vmatpush1.bf16.msra.mxu0 %v576
        %595 = vmatprep.subr.bf16.mxu0 0
        %596 = vmatpush1.bf16.msra.mxu0 %v577
        %597 = vmatprep.subr.bf16.mxu0 0
        %598 = vmatpush1.bf16.msra.mxu0 %v578
        %599 = vmatprep.subr.bf16.mxu0 0
        %600 = vmatpush1.bf16.msra.mxu0 %v579
        %601 = vmatprep.subr.bf16.mxu0 0
        %602 = vmatpush1.bf16.msra.mxu0 %v580
        %603 = vmatprep.subr.bf16.mxu0 0
        %604 = vmatpush1.bf16.msra.mxu0 %v581
        %605 = vmatprep.subr.bf16.mxu0 0
        %606 = vmatpush1.bf16.msra.mxu0 %v582
        %607 = vmatprep.subr.bf16.mxu0 0
        %608 = vmatpush1.bf16.msra.mxu0 0
        %609 = vmatprep.subr.bf16.mxu0 0
        %610 = vmatpush1.bf16.msra.mxu0 0
        %611 = vmatprep.subr.bf16.mxu0 0
        %612 = vmatpush1.bf16.msra.mxu0 0
        %613 = vmatprep.subr.bf16.mxu0 0
        %614 = vmatpush1.bf16.msra.mxu0 0
        %615 = vmatprep.subr.bf16.mxu0 0
        %616 = vmatpush1.bf16.msra.mxu0 0
        %617 = vmatprep.subr.bf16.mxu0 0
        %618 = vmatpush1.bf16.msra.mxu0 0
        %619 = vmatprep.subr.bf16.mxu0 0
        %620 = vmatpush1.bf16.msra.mxu0 0
        %621 = vmatprep.subr.bf16.mxu0 0
        %622 = vmatpush1.bf16.msra.mxu0 0
        %623 = vmatprep.mubr.bf16.mxu0 0
        %624 = vmatmul.mubr.bf16.gmra.mrb[0].mxu0 %v536
        %v625 = vpop.f32.mrb[0].mxu0
        %v626 = vadd.f32 %v541, %v625
        %v627 = vpop.f32.mrb[0].mxu0
        %v628 = vpop.f32.mrb[0].mxu0
        %v629 = vpop.f32.mrb[0].mxu0
        %630 = vdwg.mxu0
        %631 = vst [vmem:[%s361] sm:$0xff] %v626
        %s632 = sand.u32 %s211, 1
        %s633 = scalar_lea.sflag [#allocation4], %s632
        %s634 = sand.u32 %s211, 1
        %s635 = smul.addr %s634, 8
        %s636 = scalar_lea.vmem [#allocation8], %s635
        // Predicated region
        $region61: #{tpu_custom_call.1} parent=47 // pred_check
          %p637 = pneg %p221
        $region62: #{tpu_custom_call.1} parent=47 // pred_check_branch
          %639 = sbr.rel (%p637) target = $region64
        $region63: #{tpu_custom_call.1} parent=47 // pred_region
          %s641 = ssub.s32 128, 128
          %642 = vsyncadd %s633, %s641
          %s643 = sadd.s32 %s30, %s29
          %s644 = smul.addr %s643, 128
          %s645 = scalar_lea.hbm %s7, %s644
          %s647 = sshll.u32 %s636, 4
          %s648 = int_to_ptr.vmem [resolvable:$true] %s647
          %650 = dma.vmem_to_hbm [thread:$0]  %s648, 128, %s645, %s633
        $region64: #{tpu_custom_call.1} parent=47 // pred_fallthru
          _
      $region48: #{tpu_custom_call.1} parent=5 // pred_fallthru
        _
      %p651 = scmp.le.s32.totalorder 2, %s20
      // Predicated region
      $region65: #{tpu_custom_call.1} parent=5 // pred_check
        %p652 = pneg %p651
      $region66: #{tpu_custom_call.1} parent=5 // pred_check_branch
        %654 = sbr.rel (%p652) target = $region68
      $region67: #{tpu_custom_call.1} parent=5 // pred_region
        %s655 = ssub.s32 %s20, 2
        // Predicated region
        $region69: #{tpu_custom_call.1} parent=67 // pred_check
          %p656 = pneg %p227
        $region70: #{tpu_custom_call.1} parent=67 // pred_check_branch
          %658 = sbr.rel (%p656) target = $region72
        $region71: #{tpu_custom_call.1} parent=67 // pred_region
          %s659 = sand.u32 %s212, 1
          %s660 = scalar_lea.sflag [#allocation4], %s659
          %s661 = sand.u32 %s212, 1
          %s662 = smul.addr %s661, 8
          %s663 = scalar_lea.vmem [#allocation8], %s662
          %664 = dma.done %s660, 128
        $region72: #{tpu_custom_call.1} parent=67 // pred_fallthru
          _
      $region68: #{tpu_custom_call.1} parent=5 // pred_fallthru
        _
    $region6: #{tpu_custom_call.1} parent=1 // loop_footer
      %s24 = sadd.s32 1, %s20
    $region7: #{tpu_custom_call.1} parent=1 // loop_footer_branch
      %19 = sbr.rel target = $region3
    $region8: #{tpu_custom_call.1} parent=1 // loop_exit
      _
    %665 = vsyncpa [#allocation3], 1
    %s666 = scalar_lea.sflag [#allocation3], 1
    %667 = vsyncpa %s666, 1
    %668 = vsyncpa [#allocation6], 1
    %669 = vsyncpa [#allocation4], 1
    %s670 = scalar_lea.sflag [#allocation4], 1
    %671 = vsyncpa %s670, 1

// kernel: tpu_custom_call.1
$region0: #{tpu_custom_call.1}
  #allocation0 [shape = 'u32[]', space=smem, size = 0x4, offset = 0x4, fixed_abs, tag = 'smem constant byte address 0x4 - core index']
  #allocation1 [shape = 'u32[144,128]{1,0:T(1,128)}', space=vmem, size = 0x12000, scoped, tag = 'internal scratch']
  %s0 = inlined_call_operand.hbm [shape: bf16[2,8,32], index: 0, kind: input, shape index: {}]
  %s1 = inlined_call_operand.vmem [shape: f32[2,1,32], index: 1, kind: input, shape index: {}]
  %s2 = inlined_call_operand.vmem [shape: f32[2,1,32], index: 2, kind: input, shape index: {}]
  %s3 = inlined_call_operand.hbm [shape: bf16[32,128], index: 3, kind: input, shape index: {}]
  %s4 = inlined_call_operand.vmem [shape: f32[1,128], index: 4, kind: input, shape index: {}]
  %s5 = inlined_call_operand.hbm [shape: bf16[128,128], index: 5, kind: input, shape index: {}]
  %s6 = inlined_call_operand.vmem [shape: f32[1,128], index: 6, kind: input, shape index: {}]
  %s7 = inlined_call_operand.hbm [shape: f32[2,8,128], index: 7, kind: output, shape index: {}]
  %s8 = sld [smem:[#allocation0]]
  $region73: #{tpu_custom_call.1} parent=0
    _
  %s10 = ssub.s32 1, %s8
  %s11 = scalar_select 0, %s10, %s8
  $region1: #{tpu_custom_call.1} parent=0
    #allocation2 [shape = 'u8[4096]{0}', space=vmem, size = 0x1000, scoped, tag = 'input window, operand 0']
    #allocation3 [shape = 's32[2]{0}', space=sflag, size = 0x8, scoped, tag = 'scoped memory for tpu_custom_call.1']
    #allocation4 [shape = 's32[2]{0}', space=sflag, size = 0x8, scoped, tag = 'scoped memory for tpu_custom_call.1']
    #allocation5 [shape = 'u8[8192]{0}', space=vmem, size = 0x2000, scoped, tag = 'input window, operand 3, single buffered']
    #allocation6 [shape = 's32[1]{0}', space=sflag, size = 0x4, scoped, tag = 'scoped memory for tpu_custom_call.1']
    #allocation7 [shape = 'u8[32768]{0}', space=vmem, size = 0x8000, scoped, tag = 'input window, operand 5, single buffered']
    #allocation8 [shape = 'u8[8192]{0}', space=vmem, size = 0x2000, scoped, tag = 'output window, operand 0']
    %12 = vsyncpa [#allocation3], 0
    %s13 = scalar_lea.sflag [#allocation3], 1
    %14 = vsyncpa %s13, 0
    %15 = vsyncpa [#allocation6], 0
    %16 = vsyncpa [#allocation4], 0
    %s17 = scalar_lea.sflag [#allocation4], 1
    %18 = vsyncpa %s17, 0
    loop: start=0, step=1, limit=4
    $region2: #{tpu_custom_call.1} parent=1 // loop_pre_header
      _
    $region3: #{tpu_custom_call.1} parent=1 // loop_header
      %s20 = sphi 0, %s24
      %p21 = scmp.ge.s32.totalorder %s20, 4
      %s27 = sphi 0, %s39
      %s28 = sphi 0, %s35
      %s29 = sphi 0, %s27
      %s30 = sphi 0, %s28
      %s31 = sphi 0, %s29
      %s32 = sphi 0, %s30
      %s44 = sphi 0, %s46
      %s47 = sphi 0, %s44
      %s48 = sphi 0, %s47
      %s64 = sphi 0, %s48
      %s70 = sphi 0, %s72
      %s73 = sphi 0, %s70
      %s74 = sphi 0, %s73
      %s90 = sphi 0, %s74
      %s96 = sphi 0, %s98
      %s99 = sphi 0, %s96
      %s100 = sphi 0, %s99
      %s116 = sphi 0, %s100
      %s120 = sphi 0, %s120
      %s122 = sphi 0, %s120
      %s123 = sphi 0, %s122
      %s137 = sphi 0, %s123
      %s141 = sphi 0, %s141
      %s143 = sphi 0, %s141
      %s144 = sphi 0, %s143
      %s158 = sphi 0, %s144
      %s162 = sphi 0, %s162
      %s164 = sphi 0, %s162
      %s165 = sphi 0, %s164
      %s179 = sphi 0, %s165
      %s183 = sphi 0, %s183
      %s185 = sphi 0, %s183
      %s186 = sphi 0, %s185
      %s200 = sphi 0, %s186
      %s208 = sphi 0, %s210
      %s211 = sphi 0, %s208
      %s212 = sphi 0, %s211
      %s228 = sphi 0, %s212
    $region4: #{tpu_custom_call.1} parent=1 // loop_header_branch
      %23 = sbr.rel (%p21) target = $region8
    $region5: #{tpu_custom_call.1} parent=1 // loop_body
      %s25 = ssub.s32 %s20, 1
      %s26 = ssub.s32 %s20, 2
      %s33 = sadd.s32 1, %s28
      %p34 = scmp.ge.s32.totalorder %s33, 1
      %s35 = scalar_select %p34, 0, %s33
      %s36 = sadd.s32 1, %s27
      %s37 = scalar_select %p34, %s36, %s27
      %p38 = scmp.ge.s32.totalorder %s37, 2
      %s39 = scalar_select %p38, 0, %s37
      %s40 = ssub.s32 %s27, %s39
      %s41 = ssub.s32 %s28, %s35
      %s42 = sor.u32 %s40, %s41
      %p43 = scmp.eq.s32.totalorder %s42, 0
      %s45 = sadd.s32 %s44, 1
      %s46 = scalar_select %p43, %s44, %s45
      %p49 = pneg %p43
      %p50 = scmp.eq.s32.totalorder %s20, 1
      %p51 = por %p49, %p50
      %p52 = scmp.ne.s32.totalorder %s44, %s47
      %p53 = scmp.eq.s32.totalorder %s20, 0
      %p54 = por %p52, %p53
      %p55 = scmp.ne.s32.totalorder %s44, %s47
      %p56 = scmp.eq.s32.totalorder %s25, 1
      %p57 = por %p55, %p56
      %p58 = scmp.ne.s32.totalorder %s47, %s48
      %p59 = scmp.eq.s32.totalorder %s25, 0
      %p60 = por %p58, %p59
      %p61 = scmp.ne.s32.totalorder %s47, %s48
      %p62 = scmp.eq.s32.totalorder %s26, 1
      %p63 = por %p61, %p62
      %p65 = scmp.ne.s32.totalorder %s48, %s64
      %p66 = scmp.eq.s32.totalorder %s26, 0
      %p67 = por %p65, %p66
      %s68 = ssub.s32 %s27, %s39
      %p69 = scmp.eq.s32.totalorder %s68, 0
      %s71 = sadd.s32 %s70, 1
      %s72 = scalar_select %p69, %s70, %s71
      %p75 = pneg %p69
      %p76 = scmp.eq.s32.totalorder %s20, 1
      %p77 = por %p75, %p76
      %p78 = scmp.ne.s32.totalorder %s70, %s73
      %p79 = scmp.eq.s32.totalorder %s20, 0
      %p80 = por %p78, %p79
      %p81 = scmp.ne.s32.totalorder %s70, %s73
      %p82 = scmp.eq.s32.totalorder %s25, 1
      %p83 = por %p81, %p82
      %p84 = scmp.ne.s32.totalorder %s73, %s74
      %p85 = scmp.eq.s32.totalorder %s25, 0
      %p86 = por %p84, %p85
      %p87 = scmp.ne.s32.totalorder %s73, %s74
      %p88 = scmp.eq.s32.totalorder %s26, 1
      %p89 = por %p87, %p88
      %p91 = scmp.ne.s32.totalorder %s74, %s90
      %p92 = scmp.eq.s32.totalorder %s26, 0
      %p93 = por %p91, %p92
      %s94 = ssub.s32 %s27, %s39
      %p95 = scmp.eq.s32.totalorder %s94, 0
      %s97 = sadd.s32 %s96, 1
      %s98 = scalar_select %p95, %s96, %s97
      %p101 = pneg %p95
      %p102 = scmp.eq.s32.totalorder %s20, 1
      %p103 = por %p101, %p102
      %p104 = scmp.ne.s32.totalorder %s96, %s99
      %p105 = scmp.eq.s32.totalorder %s20, 0
      %p106 = por %p104, %p105
      %p107 = scmp.ne.s32.totalorder %s96, %s99
      %p108 = scmp.eq.s32.totalorder %s25, 1
      %p109 = por %p107, %p108
      %p110 = scmp.ne.s32.totalorder %s99, %s100
      %p111 = scmp.eq.s32.totalorder %s25, 0
      %p112 = por %p110, %p111
      %p113 = scmp.ne.s32.totalorder %s99, %s100
      %p114 = scmp.eq.s32.totalorder %s26, 1
      %p115 = por %p113, %p114
      %p117 = scmp.ne.s32.totalorder %s100, %s116
      %p118 = scmp.eq.s32.totalorder %s26, 0
      %p119 = por %p117, %p118
      %s121 = sadd.s32 %s120, 1
      %p124 = scmp.eq.s32.totalorder %s20, 1
      %p125 = scmp.ne.s32.totalorder %s120, %s122
      %p126 = scmp.eq.s32.totalorder %s20, 0
      %p127 = por %p125, %p126
      %p128 = scmp.ne.s32.totalorder %s120, %s122
      %p129 = scmp.eq.s32.totalorder %s25, 1
      %p130 = por %p128, %p129
      %p131 = scmp.ne.s32.totalorder %s122, %s123
      %p132 = scmp.eq.s32.totalorder %s25, 0
      %p133 = por %p131, %p132
      %p134 = scmp.ne.s32.totalorder %s122, %s123
      %p135 = scmp.eq.s32.totalorder %s26, 1
      %p136 = por %p134, %p135
      %p138 = scmp.ne.s32.totalorder %s123, %s137
      %p139 = scmp.eq.s32.totalorder %s26, 0
      %p140 = por %p138, %p139
      %s142 = sadd.s32 %s141, 1
      %p145 = scmp.eq.s32.totalorder %s20, 1
      %p146 = scmp.ne.s32.totalorder %s141, %s143
      %p147 = scmp.eq.s32.totalorder %s20, 0
      %p148 = por %p146, %p147
      %p149 = scmp.ne.s32.totalorder %s141, %s143
      %p150 = scmp.eq.s32.totalorder %s25, 1
      %p151 = por %p149, %p150
      %p152 = scmp.ne.s32.totalorder %s143, %s144
      %p153 = scmp.eq.s32.totalorder %s25, 0
      %p154 = por %p152, %p153
      %p155 = scmp.ne.s32.totalorder %s143, %s144
      %p156 = scmp.eq.s32.totalorder %s26, 1
      %p157 = por %p155, %p156
      %p159 = scmp.ne.s32.totalorder %s144, %s158
      %p160 = scmp.eq.s32.totalorder %s26, 0
      %p161 = por %p159, %p160
      %s163 = sadd.s32 %s162, 1
      %p166 = scmp.eq.s32.totalorder %s20, 1
      %p167 = scmp.ne.s32.totalorder %s162, %s164
      %p168 = scmp.eq.s32.totalorder %s20, 0
      %p169 = por %p167, %p168
      %p170 = scmp.ne.s32.totalorder %s162, %s164
      %p171 = scmp.eq.s32.totalorder %s25, 1
      %p172 = por %p170, %p171
      %p173 = scmp.ne.s32.totalorder %s164, %s165
      %p174 = scmp.eq.s32.totalorder %s25, 0
      %p175 = por %p173, %p174
      %p176 = scmp.ne.s32.totalorder %s164, %s165
      %p177 = scmp.eq.s32.totalorder %s26, 1
      %p178 = por %p176, %p177
      %p180 = scmp.ne.s32.totalorder %s165, %s179
      %p181 = scmp.eq.s32.totalorder %s26, 0
      %p182 = por %p180, %p181
      %s184 = sadd.s32 %s183, 1
      %p187 = scmp.eq.s32.totalorder %s20, 1
      %p188 = scmp.ne.s32.totalorder %s183, %s185
      %p189 = scmp.eq.s32.totalorder %s20, 0
      %p190 = por %p188, %p189
      %p191 = scmp.ne.s32.totalorder %s183, %s185
      %p192 = scmp.eq.s32.totalorder %s25, 1
      %p193 = por %p191, %p192
      %p194 = scmp.ne.s32.totalorder %s185, %s186
      %p195 = scmp.eq.s32.totalorder %s25, 0
      %p196 = por %p194, %p195
      %p197 = scmp.ne.s32.totalorder %s185, %s186
      %p198 = scmp.eq.s32.totalorder %s26, 1
      %p199 = por %p197, %p198
      %p201 = scmp.ne.s32.totalorder %s186, %s200
      %p202 = scmp.eq.s32.totalorder %s26, 0
      %p203 = por %p201, %p202
      %s204 = ssub.s32 %s27, %s39
      %s205 = ssub.s32 %s28, %s35
      %s206 = sor.u32 %s204, %s205
      %p207 = scmp.eq.s32.totalorder %s206, 0
      %s209 = sadd.s32 %s208, 1
      %s210 = scalar_select %p207, %s208, %s209
      %p213 = pneg %p207
      %p214 = scmp.eq.s32.totalorder %s20, 1
      %p215 = por %p213, %p214
      %p216 = scmp.ne.s32.totalorder %s208, %s211
      %p217 = scmp.eq.s32.totalorder %s20, 0
      %p218 = por %p216, %p217
      %p219 = scmp.ne.s32.totalorder %s208, %s211
      %p220 = scmp.eq.s32.totalorder %s25, 1
      %p221 = por %p219, %p220
      %p222 = scmp.ne.s32.totalorder %s211, %s212
      %p223 = scmp.eq.s32.totalorder %s25, 0
      %p224 = por %p222, %p223
      %p225 = scmp.ne.s32.totalorder %s211, %s212
      %p226 = scmp.eq.s32.totalorder %s26, 1
      %p227 = por %p225, %p226
      %p229 = scmp.ne.s32.totalorder %s212, %s228
      %p230 = scmp.eq.s32.totalorder %s26, 0
      %p231 = por %p229, %p230
      %p232 = scmp.le.s32.totalorder 1, %s20
      %p233 = scmp.lt.s32.totalorder %s20, 3
      %p234 = pnand %p232, %p233
      %p235 = pneg %p234
      // Predicated region
      $region9: #{tpu_custom_call.1} parent=5 // pred_check
        _
      $region10: #{tpu_custom_call.1} parent=5 // pred_check_branch
        %237 = sbr.rel (%p234) target = $region12
      $region11: #{tpu_custom_call.1} parent=5 // pred_region
        %s238 = ssub.s32 %s20, 1
        // Predicated region
        $region13: #{tpu_custom_call.1} parent=11 // pred_check
          %p239 = pneg %p133
        $region14: #{tpu_custom_call.1} parent=11 // pred_check_branch
          %241 = sbr.rel (%p239) target = $region16
        $region15: #{tpu_custom_call.1} parent=11 // pred_region
          %s243 = ssub.s32 256, 256
          %244 = vsyncadd [#allocation6], %s243
          %s245 = sshll.u32 [#allocation5], 4
          %s246 = int_to_ptr.vmem [resolvable:$true] %s245
          %251 = dma.hbm_to_vmem [thread:$0]  %s3, 256, %s246, [#allocation6], 64, 64, 4
        $region16: #{tpu_custom_call.1} parent=11 // pred_fallthru
          _
        // Predicated region
        $region17: #{tpu_custom_call.1} parent=11 // pred_check
          %p252 = pneg %p154
        $region18: #{tpu_custom_call.1} parent=11 // pred_check_branch
          %254 = sbr.rel (%p252) target = $region20
        $region19: #{tpu_custom_call.1} parent=11 // pred_region
          _
        $region20: #{tpu_custom_call.1} parent=11 // pred_fallthru
          _
        // Predicated region
        $region21: #{tpu_custom_call.1} parent=11 // pred_check
          %p255 = pneg %p175
        $region22: #{tpu_custom_call.1} parent=11 // pred_check_branch
          %257 = sbr.rel (%p255) target = $region24
        $region23: #{tpu_custom_call.1} parent=11 // pred_region
          %s259 = ssub.s32 1024, 1024
          %260 = vsyncadd [#allocation6], %s259
          %s261 = sshll.u32 [#allocation7], 4
          %s262 = int_to_ptr.vmem [resolvable:$true] %s261
          %267 = dma.hbm_to_vmem [thread:$0]  %s5, 1024, %s262, [#allocation6], 64, 64, 4
        $region24: #{tpu_custom_call.1} parent=11 // pred_fallthru
          _
        // Predicated region
        $region25: #{tpu_custom_call.1} parent=11 // pred_check
          %p268 = pneg %p196
        $region26: #{tpu_custom_call.1} parent=11 // pred_check_branch
          %270 = sbr.rel (%p268) target = $region28
        $region27: #{tpu_custom_call.1} parent=11 // pred_region
          _
        $region28: #{tpu_custom_call.1} parent=11 // pred_fallthru
          _
      $region12: #{tpu_custom_call.1} parent=5 // pred_fallthru
        _
      %p271 = scmp.lt.s32.totalorder %s20, 2
      // Predicated region
      $region29: #{tpu_custom_call.1} parent=5 // pred_check
        %p272 = pneg %p271
      $region30: #{tpu_custom_call.1} parent=5 // pred_check_branch
        %274 = sbr.rel (%p272) target = $region32
      $region31: #{tpu_custom_call.1} parent=5 // pred_region
        // Predicated region
        $region33: #{tpu_custom_call.1} parent=31 // pred_check
          %p275 = pneg %p54
        $region34: #{tpu_custom_call.1} parent=31 // pred_check_branch
          %277 = sbr.rel (%p275) target = $region36
        $region35: #{tpu_custom_call.1} parent=31 // pred_region
          %s278 = sand.u32 %s44, 1
          %s279 = scalar_lea.sflag [#allocation3], %s278
          %s280 = sand.u32 %s44, 1
          %s281 = smul.addr %s280, 4
          %s282 = scalar_lea.vmem [#allocation2], %s281
          %s284 = ssub.s32 64, 64
          %285 = vsyncadd %s279, %s284
          %s286 = sadd.s32 %s28, %s27
          %s287 = smul.addr %s286, 64
          %s288 = scalar_lea.hbm %s0, %s287
          %s290 = sshll.u32 %s282, 4
          %s291 = int_to_ptr.vmem [resolvable:$true] %s290
          %293 = dma.hbm_to_vmem [thread:$0]  %s288, 64, %s291, %s279
        $region36: #{tpu_custom_call.1} parent=31 // pred_fallthru
          _
        // Predicated region
        $region37: #{tpu_custom_call.1} parent=31 // pred_check
          %p294 = pneg %p80
        $region38: #{tpu_custom_call.1} parent=31 // pred_check_branch
          %296 = sbr.rel (%p294) target = $region40
        $region39: #{tpu_custom_call.1} parent=31 // pred_region
          %p297 = scmp.lt.s32.totalorder %s27, 1
          %s298 = scalar_select %p297, %s27, 1
          %s299 = scalar_lea.vmem %s1, %s298
        $region40: #{tpu_custom_call.1} parent=31 // pred_fallthru
          _
        // Predicated region
        $region41: #{tpu_custom_call.1} parent=31 // pred_check
          %p300 = pneg %p106
        $region42: #{tpu_custom_call.1} parent=31 // pred_check_branch
          %302 = sbr.rel (%p300) target = $region44
        $region43: #{tpu_custom_call.1} parent=31 // pred_region
          %p303 = scmp.lt.s32.totalorder %s27, 1
          %s304 = scalar_select %p303, %s27, 1
          %s305 = scalar_lea.vmem %s2, %s304
        $region44: #{tpu_custom_call.1} parent=31 // pred_fallthru
          _
      $region32: #{tpu_custom_call.1} parent=5 // pred_fallthru
        _
      %p306 = scmp.le.s32.totalorder 1, %s20
      %p307 = scmp.lt.s32.totalorder %s20, 3
      %p308 = pnand %p306, %p307
      %p309 = pneg %p308
      // Predicated region
      $region45: #{tpu_custom_call.1} parent=5 // pred_check
        _
      $region46: #{tpu_custom_call.1} parent=5 // pred_check_branch
        %311 = sbr.rel (%p308) target = $region48
      $region47: #{tpu_custom_call.1} parent=5 // pred_region
        %s312 = ssub.s32 %s20, 1
        %s313 = sand.u32 %s47, 1
        %s314 = scalar_lea.sflag [#allocation3], %s313
        %s315 = sand.u32 %s47, 1
        %s316 = smul.addr %s315, 4
        %s317 = scalar_lea.vmem [#allocation2], %s316
        // Predicated region
        $region49: #{tpu_custom_call.1} parent=47 // pred_check
          %p318 = pneg %p60
        $region50: #{tpu_custom_call.1} parent=47 // pred_check_branch
          %320 = sbr.rel (%p318) target = $region52
        $region51: #{tpu_custom_call.1} parent=47 // pred_region
          %321 = dma.done %s314, 64
        $region52: #{tpu_custom_call.1} parent=47 // pred_fallthru
          _
        // Predicated region
        $region53: #{tpu_custom_call.1} parent=47 // pred_check
          %p322 = pneg %p133
        $region54: #{tpu_custom_call.1} parent=47 // pred_check_branch
          %324 = sbr.rel (%p322) target = $region56
        $region55: #{tpu_custom_call.1} parent=47 // pred_region
          %325 = dma.done [#allocation6], 256
        $region56: #{tpu_custom_call.1} parent=47 // pred_fallthru
          _
        // Predicated region
        $region57: #{tpu_custom_call.1} parent=47 // pred_check
          %p326 = pneg %p175
        $region58: #{tpu_custom_call.1} parent=47 // pred_check_branch
          %328 = sbr.rel (%p326) target = $region60
        $region59: #{tpu_custom_call.1} parent=47 // pred_region
          %329 = dma.done [#allocation6], 1024
        $region60: #{tpu_custom_call.1} parent=47 // pred_fallthru
          _
        %s330 = sand.u32 %s47, 1
        %s331 = scalar_lea.sflag [#allocation3], %s330
        %s332 = sand.u32 %s47, 1
        %s333 = smul.addr %s332, 4
        %s334 = scalar_lea.vmem [#allocation2], %s333
        %p335 = pneg %p60
        %p336 = pneg %p57
        %p337 = scmp.lt.s32.totalorder %s29, 1
        %s338 = scalar_select %p337, %s29, 1
        %s339 = scalar_lea.vmem %s1, %s338
        %p340 = pneg %p86
        %p341 = pneg %p83
        %p342 = scmp.lt.s32.totalorder %s29, 1
        %s343 = scalar_select %p342, %s29, 1
        %s344 = scalar_lea.vmem %s2, %s343
        %p345 = pneg %p112
        %p346 = pneg %p109
        %p347 = pneg %p133
        %p348 = pneg %p130
        %p349 = pneg %p154
        %p350 = pneg %p151
        %p351 = pneg %p175
        %p352 = pneg %p172
        %p353 = pneg %p196
        %p354 = pneg %p193
        %p355 = pneg %p224
        %p356 = pneg %p221
        %s357 = sand.u32 %s211, 1
        %s358 = scalar_lea.sflag [#allocation4], %s357
        %s359 = sand.u32 %s211, 1
        %s360 = smul.addr %s359, 8
        %s361 = scalar_lea.vmem [#allocation8], %s360
        %p362 = scmp.lt.s32.totalorder %s29, 1
        %s363 = scalar_select %p362, %s29, 1
        %s364 = scalar_lea.vmem %s1, %s363
        %p365 = scmp.lt.s32.totalorder %s29, 1
        %s366 = scalar_select %p365, %s29, 1
        %s367 = scalar_lea.vmem %s2, %s366
        %v372 = vld [vmem:[%s317] sm:$0xf]
        %v373 = vunpack.c.l.bf16 %v372
        %v374 = vld [vmem:[%s364] sm:$0x1]
        %v375 = vld [vmem:[%s367] sm:$0x1]
        %vm376 = vcmask 261120
        %v377 = vsel %vm376, %v373, 0.0
        %378 = vadd.xlane.f32.xlu0 %v377
        %v379 = vpop.xlane.xlu0 %378
        %v380 = vmul.f32 %v373, %v373
        %v381 = vsel %vm376, %v380, 0.0
        %382 = vadd.xlane.f32.xlu0 %v381
        %v383 = vpop.xlane.xlu0 %382
        %v384 = vmul.f32 %v379, 0.03125
        %v385 = vmul.f32 %v383, 0.03125
        %v386 = vmul.f32 %v384, %v384
        %v387 = vsub.f32 %v385, %v386
        %v388 = vmax.f32 %v387, 0.0
        %v389 = vsub.f32 %v373, %v384
        %v390 = vadd.f32 %v388, 1e-05
        %v391 = vrsqrt.pop %v390
        %v392 = vmul.f32 %v389, %v391
        %v394 = vlaneseq
        %v395 = vshrl.u32 %v394, 7
        %v396 = vsub.s32 0, %v395
        %v397 = vrot.slane %v375, %v396
        %v399 = vmul.f32 %v392, %v397
        %v401 = vlaneseq
        %v402 = vshrl.u32 %v401, 7
        %v403 = vsub.s32 0, %v402
        %v404 = vrot.slane %v374, %v403
        %v406 = vadd.f32 %v399, %v404
        %v407 = vsel %vm376, %v406, 0.0
        %408 = vadd.xlane.f32.xlu0 %v407
        %v409 = vpop.xlane.xlu0 %408
        %v410 = vmul.f32 %v406, %v406
        %v411 = vsel %vm376, %v410, 0.0
        %412 = vadd.xlane.f32.xlu0 %v411
        %v413 = vpop.xlane.xlu0 %412
        %v414 = vmul.f32 %v409, 0.03125
        %v415 = vmul.f32 %v413, 0.03125
        %v416 = vmul.f32 %v414, %v414
        %v417 = vsub.f32 %v415, %v416
        %v418 = vmax.f32 %v417, 0.0
        %v419 = vsub.f32 %v406, %v414
        %v420 = vadd.f32 %v418, 1e-05
        %v421 = vrsqrt.pop %v420
        %v422 = vmul.f32 %v419, %v421
        %v423 = vpack.c.bf16 %v422, %v422
        %v424 = vld [vmem:[#allocation5] sm:$0xf]
        %v425 = vld [vmem:[#allocation5 + $0x4] sm:$0xf]
        %v426 = vld [vmem:[#allocation5 + $0x8] sm:$0xf]
        %v427 = vld [vmem:[#allocation5 + $0xc] sm:$0xf]
        %v428 = vld [vmem:[%s4] sm:$0x1]
        %v429 = vld [vmem:[#allocation7] sm:$0xf]
        %v430 = vld [vmem:[#allocation7 + $0x4] sm:$0xf]
        %v431 = vld [vmem:[#allocation7 + $0x8] sm:$0xf]
        %v432 = vld [vmem:[#allocation7 + $0xc] sm:$0xf]
        %v433 = vld [vmem:[#allocation7 + $0x10] sm:$0xf]
        %v434 = vld [vmem:[#allocation7 + $0x14] sm:$0xf]
        %v435 = vld [vmem:[#allocation7 + $0x18] sm:$0xf]
        %v436 = vld [vmem:[#allocation7 + $0x1c] sm:$0xf]
        %v437 = vld [vmem:[#allocation7 + $0x20] sm:$0xf]
        %v438 = vld [vmem:[#allocation7 + $0x24] sm:$0xf]
        %v439 = vld [vmem:[#allocation7 + $0x28] sm:$0xf]
        %v440 = vld [vmem:[#allocation7 + $0x2c] sm:$0xf]
        %v441 = vld [vmem:[#allocation7 + $0x30] sm:$0xf]
        %v442 = vld [vmem:[#allocation7 + $0x34] sm:$0xf]
        %v443 = vld [vmem:[#allocation7 + $0x38] sm:$0xf]
        %v444 = vld [vmem:[#allocation7 + $0x3c] sm:$0xf]
        %v445 = vld [vmem:[%s6] sm:$0x1]
        %v447 = vlaneseq
        %v448 = vshrl.u32 %v447, 7
        %v449 = vsub.s32 0, %v448
        %v450 = vrot.slane %v428, %v449
        %v456 = vunpack.c.l.b16 %v424
        %v457 = vunpack.c.l.b16 %v425
        %v458 = vunpack.c.l.b16 %v426
        %v459 = vunpack.c.l.b16 %v427
        %v460 = vpack.c.b16 %v457, %v456
        %v461 = vpack.c.b16 %v459, %v458
        %v465 = vsel %vm376, %v423, 0
        %467 = vmatprep.subr.bf16.mxu0 0
        %468 = vmatpush1.bf16.msra.mxu0 %v460
        %469 = vmatprep.subr.bf16.mxu0 0
        %470 = vmatpush1.bf16.msra.mxu0 %v461
        %471 = vmatprep.subr.bf16.mxu0 0
        %472 = vmatpush1.bf16.msra.mxu0 0
        %473 = vmatprep.subr.bf16.mxu0 0
        %474 = vmatpush1.bf16.msra.mxu0 0
        %475 = vmatprep.subr.bf16.mxu0 0
        %476 = vmatpush1.bf16.msra.mxu0 0
        %477 = vmatprep.subr.bf16.mxu0 0
        %478 = vmatpush1.bf16.msra.mxu0 0
        %479 = vmatprep.subr.bf16.mxu0 0
        %480 = vmatpush1.bf16.msra.mxu0 0
        %481 = vmatprep.subr.bf16.mxu0 0
        %482 = vmatpush1.bf16.msra.mxu0 0
        %483 = vmatprep.subr.bf16.mxu0 0
        %484 = vmatpush1.bf16.msra.mxu0 0
        %485 = vmatprep.subr.bf16.mxu0 0
        %486 = vmatpush1.bf16.msra.mxu0 0
        %487 = vmatprep.subr.bf16.mxu0 0
        %488 = vmatpush1.bf16.msra.mxu0 0
        %489 = vmatprep.subr.bf16.mxu0 0
        %490 = vmatpush1.bf16.msra.mxu0 0
        %491 = vmatprep.subr.bf16.mxu0 0
        %492 = vmatpush1.bf16.msra.mxu0 0
        %493 = vmatprep.subr.bf16.mxu0 0
        %494 = vmatpush1.bf16.msra.mxu0 0
        %495 = vmatprep.subr.bf16.mxu0 0
        %496 = vmatpush1.bf16.msra.mxu0 0
        %497 = vmatprep.subr.bf16.mxu0 0
        %498 = vmatpush1.bf16.msra.mxu0 0
        %499 = vmatprep.mubr.bf16.mxu0 0
        %500 = vmatmul.mubr.bf16.gmra.mrb[0].mxu0 %v465
        %v501 = vpop.f32.mrb[0].mxu0
        %v502 = vadd.f32 %v450, %v501
        %v503 = vpop.f32.mrb[0].mxu0
        %v504 = vpop.f32.mrb[0].mxu0
        %v505 = vpop.f32.mrb[0].mxu0
        %506 = vdwg.mxu0
        %v507 = vpack.c.bf16 %v502, %v502
        %v508 = vmul.bf16 %v507, 1070350284
        %v509 = vmul.bf16 %v507, %v507
        %v510 = vmul.bf16 %v509, %v507
        %v511 = vmul.bf16 %v510, 1032994194
        %v512 = vadd.bf16 %v508, %v511
        %v513 = vxor.u32 %v512, 2147516416
        %v515 = vmul.bf16 %v513, 1069105081
        %v516 = vpow.bf16.pop %v515
        %v517 = vadd.bf16 %v516, 1065369472
        %v518 = vrcp.bf16.pop %v517
        %v519 = vmul.bf16 1065369472, %v518
        %v520 = vmul.bf16 %v507, %v519
        %v521 = vunpack.c.l.bf16 %v520
        %522 = vadd.xlane.f32.xlu0 %v521
        %v523 = vpop.xlane.xlu0 %522
        %v524 = vmul.f32 %v521, %v521
        %525 = vadd.xlane.f32.xlu0 %v524
        %v526 = vpop.xlane.xlu0 %525
        %v527 = vmul.f32 %v523, 0.0078125
        %v528 = vmul.f32 %v526, 0.0078125
        %v529 = vmul.f32 %v527, %v527
        %v530 = vsub.f32 %v528, %v529
        %v531 = vmax.f32 %v530, 0.0
        %v532 = vsub.f32 %v521, %v527
        %v533 = vadd.f32 %v531, 1e-05
        %v534 = vrsqrt.pop %v533
        %v535 = vmul.f32 %v532, %v534
        %v536 = vpack.c.bf16 %v535, %v535
        %v538 = vlaneseq
        %v539 = vshrl.u32 %v538, 7
        %v540 = vsub.s32 0, %v539
        %v541 = vrot.slane %v445, %v540
        %v559 = vunpack.c.l.b16 %v429
        %v560 = vunpack.c.l.b16 %v430
        %v561 = vunpack.c.l.b16 %v431
        %v562 = vunpack.c.l.b16 %v432
        %v563 = vunpack.c.l.b16 %v433
        %v564 = vunpack.c.l.b16 %v434
        %v565 = vunpack.c.l.b16 %v435
        %v566 = vunpack.c.l.b16 %v436
        %v567 = vunpack.c.l.b16 %v437
        %v568 = vunpack.c.l.b16 %v438
        %v569 = vunpack.c.l.b16 %v439
        %v570 = vunpack.c.l.b16 %v440
        %v571 = vunpack.c.l.b16 %v441
        %v572 = vunpack.c.l.b16 %v442
        %v573 = vunpack.c.l.b16 %v443
        %v574 = vunpack.c.l.b16 %v444
        %v575 = vpack.c.b16 %v560, %v559
        %v576 = vpack.c.b16 %v562, %v561
        %v577 = vpack.c.b16 %v564, %v563
        %v578 = vpack.c.b16 %v566, %v565
        %v579 = vpack.c.b16 %v568, %v567
        %v580 = vpack.c.b16 %v570, %v569
        %v581 = vpack.c.b16 %v572, %v571
        %v582 = vpack.c.b16 %v574, %v573
        %591 = vmatprep.subr.bf16.mxu0 0
        %592 = vmatpush1.bf16.msra.mxu0 %v575
        %593 = vmatprep.subr.bf16.mxu0 0
        %594 = vmatpush1.bf16.msra.mxu0 %v576
        %595 = vmatprep.subr.bf16.mxu0 0
        %596 = vmatpush1.bf16.msra.mxu0 %v577
        %597 = vmatprep.subr.bf16.mxu0 0
        %598 = vmatpush1.bf16.msra.mxu0 %v578
        %599 = vmatprep.subr.bf16.mxu0 0
        %600 = vmatpush1.bf16.msra.mxu0 %v579
        %601 = vmatprep.subr.bf16.mxu0 0
        %602 = vmatpush1.bf16.msra.mxu0 %v580
        %603 = vmatprep.subr.bf16.mxu0 0
        %604 = vmatpush1.bf16.msra.mxu0 %v581
        %605 = vmatprep.subr.bf16.mxu0 0
        %606 = vmatpush1.bf16.msra.mxu0 %v582
        %607 = vmatprep.subr.bf16.mxu0 0
        %608 = vmatpush1.bf16.msra.mxu0 0
        %609 = vmatprep.subr.bf16.mxu0 0
        %610 = vmatpush1.bf16.msra.mxu0 0
        %611 = vmatprep.subr.bf16.mxu0 0
        %612 = vmatpush1.bf16.msra.mxu0 0
        %613 = vmatprep.subr.bf16.mxu0 0
        %614 = vmatpush1.bf16.msra.mxu0 0
        %615 = vmatprep.subr.bf16.mxu0 0
        %616 = vmatpush1.bf16.msra.mxu0 0
        %617 = vmatprep.subr.bf16.mxu0 0
        %618 = vmatpush1.bf16.msra.mxu0 0
        %619 = vmatprep.subr.bf16.mxu0 0
        %620 = vmatpush1.bf16.msra.mxu0 0
        %621 = vmatprep.subr.bf16.mxu0 0
        %622 = vmatpush1.bf16.msra.mxu0 0
        %623 = vmatprep.mubr.bf16.mxu0 0
        %624 = vmatmul.mubr.bf16.gmra.mrb[0].mxu0 %v536
        %v625 = vpop.f32.mrb[0].mxu0
        %v626 = vadd.f32 %v541, %v625
        %v627 = vpop.f32.mrb[0].mxu0
        %v628 = vpop.f32.mrb[0].mxu0
        %v629 = vpop.f32.mrb[0].mxu0
        %630 = vdwg.mxu0
        %631 = vst [vmem:[%s361] sm:$0xff] %v626
        %s632 = sand.u32 %s211, 1
        %s633 = scalar_lea.sflag [#allocation4], %s632
        %s634 = sand.u32 %s211, 1
        %s635 = smul.addr %s634, 8
        %s636 = scalar_lea.vmem [#allocation8], %s635
        // Predicated region
        $region61: #{tpu_custom_call.1} parent=47 // pred_check
          %p637 = pneg %p221
        $region62: #{tpu_custom_call.1} parent=47 // pred_check_branch
          %639 = sbr.rel (%p637) target = $region64
        $region63: #{tpu_custom_call.1} parent=47 // pred_region
          %s641 = ssub.s32 128, 128
          %642 = vsyncadd %s633, %s641
          %s643 = sadd.s32 %s30, %s29
          %s644 = smul.addr %s643, 128
          %s645 = scalar_lea.hbm %s7, %s644
          %s647 = sshll.u32 %s636, 4
          %s648 = int_to_ptr.vmem [resolvable:$true] %s647
          %650 = dma.vmem_to_hbm [thread:$0]  %s648, 128, %s645, %s633
        $region64: #{tpu_custom_call.1} parent=47 // pred_fallthru
          _
      $region48: #{tpu_custom_call.1} parent=5 // pred_fallthru
        _
      %p651 = scmp.le.s32.totalorder 2, %s20
      // Predicated region
      $region65: #{tpu_custom_call.1} parent=5 // pred_check
        %p652 = pneg %p651
      $region66: #{tpu_custom_call.1} parent=5 // pred_check_branch
        %654 = sbr.rel (%p652) target = $region68
      $region67: #{tpu_custom_call.1} parent=5 // pred_region
        %s655 = ssub.s32 %s20, 2
        // Predicated region
        $region69: #{tpu_custom_call.1} parent=67 // pred_check
          %p656 = pneg %p227
        $region70: #{tpu_custom_call.1} parent=67 // pred_check_branch
          %658 = sbr.rel (%p656) target = $region72
        $region71: #{tpu_custom_call.1} parent=67 // pred_region
          %s659 = sand.u32 %s212, 1
          %s660 = scalar_lea.sflag [#allocation4], %s659
          %s661 = sand.u32 %s212, 1
          %s662 = smul.addr %s661, 8
          %s663 = scalar_lea.vmem [#allocation8], %s662
          %664 = dma.done %s660, 128
        $region72: #{tpu_custom_call.1} parent=67 // pred_fallthru
          _
      $region68: #{tpu_custom_call.1} parent=5 // pred_fallthru
        _
    $region6: #{tpu_custom_call.1} parent=1 // loop_footer
      %s24 = sadd.s32 1, %s20
    $region7: #{tpu_custom_call.1} parent=1 // loop_footer_branch
      %19 = sbr.rel target = $region3
    $region8: #{tpu_custom_call.1} parent=1 // loop_exit
      _
    %665 = vsyncpa [#allocation3], 1
    %s666 = scalar_lea.sflag [#allocation3], 1
    %667 = vsyncpa %s666, 1
    %668 = vsyncpa [#allocation6], 1
    %669 = vsyncpa [#allocation4], 1
    %s670 = scalar_lea.sflag [#allocation4], 1
    %671 = vsyncpa %s670, 1

</llo_original>
